<compile_context>
chip_gen: v5e
topology: v5e:2x2
jax: 0.10.0
libtpu: 0.0.40
codegen_flags: <defaults>
</compile_context>

<pallas_src>
import functools

import jax
import jax.numpy as jnp
import numpy as np
from jax.experimental import pallas as pl
from jax.experimental.pallas import tpu as pltpu


# ----------------------------- Pallas kernel --------------------------------

def cnn_kernel(x_ref,
               w1_ref, t1_ref, w2_ref, t2_ref, w3_ref, t3_ref,
               wf1_ref, bf1_ref, wf2_ref, bf2_ref, wf3_ref, bf3_ref,
               out_ref, *, seq_len, compute_dtype):
    # x arrives in compute_dtype (bf16: half the HBM read); rolls/masks run in f32.
    x = x_ref[...].astype(jnp.float32)      # (Bt*L, Cin): Bt samples stacked on sublanes

    def conv_bn_relu_pool(h, w_ref, t_ref, seg):
        M, C = h.shape
        # within-sample row position; seg is a power of two -> bitwise AND, built at
        # (M, 1) and broadcast inside jnp.where (minimal VALU footprint).
        pos = jax.lax.broadcasted_iota(jnp.int32, (M, 1), 0) & (seg - 1)
        # sublane rotations stay on the (idle) XLU slot; rows that would wrap across a
        # sample boundary or the sequence edge are zeroed -> Conv1d padding=1 semantics.
        h_prev = jnp.where(pos != 0, pltpu.roll(h, shift=1, axis=0), 0.0)
        h_next = jnp.where(pos != seg - 1, pltpu.roll(h, shift=M - 1, axis=0), 0.0)
        # per-tap accumulated dots: no 3C-lane concat relayout, operands lane-aligned.
        y = jnp.dot(h_prev.astype(compute_dtype), w_ref[0],
                    preferred_element_type=jnp.float32)
        y += jnp.dot(h.astype(compute_dtype), w_ref[1],
                     preferred_element_type=jnp.float32)
        y += jnp.dot(h_next.astype(compute_dtype), w_ref[2],
                     preferred_element_type=jnp.float32)
        y = jnp.maximum(y + t_ref[...], 0.0)          # folded BN + conv bias, ReLU
        cout = y.shape[-1]
        # MaxPool1d(2, 2).  TODO(synk): an even/odd strided-slice max would avoid this
        # 3-D sublane reshape, but strided value slices are not guaranteed to lower.
        return jnp.max(y.reshape(M // 2, 2, cout), axis=1)

    h = conv_bn_relu_pool(x, w1_ref, t1_ref, seq_len)         # (Bt*L/2,  64)
    h = conv_bn_relu_pool(h, w2_ref, t2_ref, seq_len // 2)    # (Bt*L/4, 128)
    h = conv_bn_relu_pool(h, w3_ref, t3_ref, seq_len // 4)    # (Bt*L/8 = Bt, 256)

    # view(-1, 256*1): L/8 == 1, so each row already holds one sample's 256 features.
    h = jnp.maximum(
        jnp.dot(h.astype(compute_dtype), wf1_ref[...],
                preferred_element_type=jnp.float32) + bf1_ref[...], 0.0)
    # dropout is identity at inference (eval mode) -> omitted.
    h = jnp.maximum(
        jnp.dot(h.astype(compute_dtype), wf2_ref[...],
                preferred_element_type=jnp.float32) + bf2_ref[...], 0.0)
    logits = jnp.dot(h.astype(compute_dtype), wf3_ref[...],
                     preferred_element_type=jnp.float32) + bf3_ref[...]
    out_ref[...] = logits.astype(out_ref.dtype)       # lane-dense bf16 writeback


# ------------------------------ JAX wrapper ----------------------------------

def cnn_forward(x_ncl, conv_params, fc_params, block_b=512,
                compute_dtype=jnp.bfloat16, out_dtype=jnp.bfloat16):
    B, Cin, L = x_ncl.shape
    assert L % 8 == 0 and L // 8 == 1, "flat_features = 256*1 implies sequence length 8"
    f32 = jnp.float32

    # ---- fold BatchNorm (eval) + conv bias into the per-tap conv weights ----
    conv_flat = []
    for (w, b, scale, shift) in conv_params:            # w: (3, Cin_l, Cout_l)
        w_f = (w.astype(f32) * scale.reshape(1, 1, -1)).astype(compute_dtype)
        t_f = (shift + b * scale).astype(f32)            # (1, Cout_l)
        conv_flat += [w_f, t_f]

    (wf1, bf1), (wf2, bf2), (wf3, bf3) = fc_params
    out_size = wf3.shape[1]
    out_pad = max(128, ((out_size + 127) // 128) * 128)  # lane-dense output store
    wf3p = jnp.zeros((wf3.shape[0], out_pad), f32).at[:, :out_size].set(wf3)
    bf3p = jnp.zeros((1, out_pad), f32).at[:, :out_size].set(bf3)
    flat = conv_flat + [wf1.astype(compute_dtype), bf1.astype(f32),
                        wf2.astype(compute_dtype), bf2.astype(f32),
                        wf3p.astype(compute_dtype), bf3p]

    # ---- batch tiling: Bt samples per grid step (big tile -> amortized step cost) ----
    b8 = pl.cdiv(B, 8) * 8
    Bt = min(block_b, b8)
    if Bt == b8 and Bt >= 256:
        # whole batch would be one grid step: split in two so the "parallel" axis can
        # shard across v7x's two TensorCores.
        Bt = pl.cdiv(Bt // 2, 8) * 8
    B_pad = pl.cdiv(B, Bt) * Bt

    x_nlc = jnp.transpose(x_ncl, (0, 2, 1)).astype(compute_dtype)   # (B, L, Cin)
    if B_pad != B:
        x_nlc = jnp.concatenate(
            [x_nlc, jnp.zeros((B_pad - B, L, Cin), compute_dtype)], axis=0)
    x_flat = x_nlc.reshape(B_pad * L, Cin)                          # (B_pad*L, Cin)

    in_specs = [pl.BlockSpec((Bt * L, Cin), lambda i: (i, 0))]
    # Replicated parameters: constant index_map -> fetched once, stay resident.
    # TODO(synk): pipeline_mode=pl.Buffered(1) would also drop their second VMEM buffer
    # (~0.4 MB); left at the default to keep lowering portable.
    in_specs += [pl.BlockSpec(p.shape, lambda i, nd=p.ndim: (0,) * nd) for p in flat]
    out_spec = pl.BlockSpec((Bt, out_pad), lambda i: (i, 0))

    flops = 2 * B_pad * (L * 3 * Cin * 64
                         + (L // 2) * 3 * 64 * 128
                         + (L // 4) * 3 * 128 * 256
                         + 256 * 128 + 128 * 64 + 64 * out_pad)
    nbytes = lambda a: int(a.size) * a.dtype.itemsize
    bytes_accessed = (nbytes(x_flat) + sum(nbytes(p) for p in flat)
                      + B_pad * out_pad * np.dtype(out_dtype).itemsize)

    out = pl.pallas_call(
        functools.partial(cnn_kernel, seq_len=L, compute_dtype=compute_dtype),
        out_shape=jax.ShapeDtypeStruct((B_pad, out_pad), out_dtype),
        grid_spec=pltpu.PrefetchScalarGridSpec(
            num_scalar_prefetch=0,
            grid=(B_pad // Bt,),
            in_specs=in_specs,
            out_specs=out_spec),
        compiler_params=pltpu.CompilerParams(
            dimension_semantics=("parallel",),
            vmem_limit_bytes=64 * 1024 * 1024),
        cost_estimate=pl.CostEstimate(flops=int(flops), transcendentals=0,
                                      bytes_accessed=int(bytes_accessed)),
    )(x_flat, *flat)
    return out[:B, :out_size].astype(jnp.float32)


# -------------------- deterministic parameter construction -------------------

def init_params(key, cin, out_size, eps=1e-5):
    keys = jax.random.split(key, 32)
    it = iter(keys)
    nk = lambda: next(it)
    uni = lambda k, shape, b: jax.random.uniform(k, shape, jnp.float32, -b, b)

    chans = [cin, 64, 128, 256]
    conv = []
    for l in range(3):
        ci, co = chans[l], chans[l + 1]
        bound = 1.0 / (ci * 3) ** 0.5
        w = uni(nk(), (3, ci, co), bound)          # per-tap (K, Cin, Cout)
        b = uni(nk(), (1, co), bound)
        gamma = 1.0 + 0.1 * jax.random.normal(nk(), (1, co), jnp.float32)
        beta = 0.1 * jax.random.normal(nk(), (1, co), jnp.float32)
        mean = 0.1 * jax.random.normal(nk(), (1, co), jnp.float32)
        var = jnp.abs(jax.random.normal(nk(), (1, co), jnp.float32)) + 0.5
        scale = gamma / jnp.sqrt(var + eps)
        shift = beta - mean * scale
        conv.append((w, b, scale, shift))

    fcs = []
    for (din, dout) in [(256, 128), (128, 64), (64, out_size)]:
        bound = 1.0 / din ** 0.5
        fcs.append((uni(nk(), (din, dout), bound), uni(nk(), (1, dout), bound)))
    return conv, fcs


# --------------------------- pure-JAX reference -------------------------------

def ref_forward(x_ncl, conv_params, fc_params):
    y = x_ncl.astype(jnp.float32)
    for (w, b, s, t) in conv_params:
        w_oik = jnp.transpose(w, (2, 1, 0))  # (Cout, Cin, K) like torch Conv1d weight
        y = jax.lax.conv_general_dilated(
            y, w_oik, window_strides=(1,), padding=((1, 1),),
            dimension_numbers=("NCH", "OIH", "NCH"))
        y = y + b.reshape(1, -1, 1)
        y = y * s.reshape(1, -1, 1) + t.reshape(1, -1, 1)
        y = jnp.maximum(y, 0.0)
        B_, C_, L_ = y.shape
        y = jnp.max(y.reshape(B_, C_, L_ // 2, 2), axis=-1)
    h = y.reshape(y.shape[0], -1)  # (B, 256)
    (w1, b1), (w2, b2), (w3, b3) = fc_params
    h = jnp.maximum(h @ w1 + b1, 0.0)
    h = jnp.maximum(h @ w2 + b2, 0.0)
    return h @ w3 + b3


# ---------------------------------- main --------------------------------------

if __name__ == "__main__":
    key = jax.random.PRNGKey(0)
    kx, kp = jax.random.split(key)

    # flat_features = 256*1 implies seq length 8 (three stride-2 pools -> 1)
    B, Cin, L, out_size = 2, 4, 8, 6
    x = jax.random.normal(kx, (B, Cin, L), jnp.float32)  # PyTorch NCL layout

    conv_p, fc_p = init_params(kp, Cin, out_size)

    y = cnn_forward(x, conv_p, fc_p)
    jax.block_until_ready(y)

    y_ref = ref_forward(x, conv_p, fc_p)
    assert y.shape == (B, out_size)
    # bf16 MXU operands with f32 accumulation -> parity vs f32 reference at ~1e-2 level.
    assert jnp.allclose(y, y_ref, atol=3e-2, rtol=3e-2), (y, y_ref)
    print("KERNEL_OK")
</pallas_src>

<mosaic_0001>
module attributes {stable_mosaic.version = 11 : i64} {
  func.func @cnn_kernel(%arg0: i32, %arg1: memref<64x4xbf16, #tpu.memory_space<vmem>>, %arg2: memref<3x4x64xbf16, #tpu.memory_space<vmem>>, %arg3: memref<1x64xf32, #tpu.memory_space<vmem>>, %arg4: memref<3x64x128xbf16, #tpu.memory_space<vmem>>, %arg5: memref<1x128xf32, #tpu.memory_space<vmem>>, %arg6: memref<3x128x256xbf16, #tpu.memory_space<vmem>>, %arg7: memref<1x256xf32, #tpu.memory_space<vmem>>, %arg8: memref<256x128xbf16, #tpu.memory_space<vmem>>, %arg9: memref<1x128xf32, #tpu.memory_space<vmem>>, %arg10: memref<128x64xbf16, #tpu.memory_space<vmem>>, %arg11: memref<1x64xf32, #tpu.memory_space<vmem>>, %arg12: memref<64x128xbf16, #tpu.memory_space<vmem>>, %arg13: memref<1x128xf32, #tpu.memory_space<vmem>>, %arg14: memref<8x128xbf16, #tpu.memory_space<vmem>>) attributes {dimension_semantics = [#tpu.dimension_semantics<parallel>], iteration_bounds = array<i64: 1>, scalar_prefetch = 0 : i64, scratch_operands = 0 : i64, tpu.core_type = #tpu.core_type<tc>, window_params = [{transform_indices = @transform_0, window_bounds = array<i64: 64, 4>}, {pipeline_mode = #tpu.pipeline_mode<synchronous>, transform_indices = @transform_1, window_bounds = array<i64: 3, 4, 64>}, {pipeline_mode = #tpu.pipeline_mode<synchronous>, transform_indices = @transform_2, window_bounds = array<i64: 1, 64>}, {pipeline_mode = #tpu.pipeline_mode<synchronous>, transform_indices = @transform_3, window_bounds = array<i64: 3, 64, 128>}, {pipeline_mode = #tpu.pipeline_mode<synchronous>, transform_indices = @transform_4, window_bounds = array<i64: 1, 128>}, {pipeline_mode = #tpu.pipeline_mode<synchronous>, transform_indices = @transform_5, window_bounds = array<i64: 3, 128, 256>}, {pipeline_mode = #tpu.pipeline_mode<synchronous>, transform_indices = @transform_6, window_bounds = array<i64: 1, 256>}, {pipeline_mode = #tpu.pipeline_mode<synchronous>, transform_indices = @transform_7, window_bounds = array<i64: 256, 128>}, {pipeline_mode = #tpu.pipeline_mode<synchronous>, transform_indices = @transform_8, window_bounds = array<i64: 1, 128>}, {pipeline_mode = #tpu.pipeline_mode<synchronous>, transform_indices = @transform_9, window_bounds = array<i64: 128, 64>}, {pipeline_mode = #tpu.pipeline_mode<synchronous>, transform_indices = @transform_10, window_bounds = array<i64: 1, 64>}, {pipeline_mode = #tpu.pipeline_mode<synchronous>, transform_indices = @transform_11, window_bounds = array<i64: 64, 128>}, {pipeline_mode = #tpu.pipeline_mode<synchronous>, transform_indices = @transform_12, window_bounds = array<i64: 1, 128>}, {transform_indices = @transform_13, window_bounds = array<i64: 8, 128>}]} {
    %c0 = arith.constant 0 : index
    %c0_0 = arith.constant 0 : index
    %0 = vector.load %arg1[%c0, %c0_0] : memref<64x4xbf16, #tpu.memory_space<vmem>>, vector<64x4xbf16>
    %1 = arith.extf %0 : vector<64x4xbf16> to vector<64x4xf32>
    %2 = tpu.iota {dimensions = array<i32: 0>} : vector<64x1xi32>
    %c7_i32 = arith.constant 7 : i32
    %3 = vector.broadcast %c7_i32 : i32 to vector<64x1xi32>
    %4 = arith.andi %2, %3 : vector<64x1xi32>
    %c0_i32 = arith.constant 0 : i32
    %5 = vector.broadcast %c0_i32 : i32 to vector<64x1xi32>
    %6 = arith.cmpi ne, %4, %5 : vector<64x1xi32>
    %c1_i32 = arith.constant 1 : i32
    %7 = tpu.dynamic_rotate %1 by %c1_i32 dim 0 : vector<64x4xf32>, i32 -> vector<64x4xf32>
    %cst = arith.constant 0.000000e+00 : f32
    %8 = vector.shape_cast %6 : vector<64x1xi1> to vector<64x1xi1>
    %9 = vector.broadcast %8 : vector<64x1xi1> to vector<64x4xi1>
    %10 = vector.broadcast %cst : f32 to vector<64x4xf32>
    %11 = arith.select %9, %7, %10 : vector<64x4xi1>, vector<64x4xf32>
    %c7_i32_1 = arith.constant 7 : i32
    %12 = vector.broadcast %c7_i32_1 : i32 to vector<64x1xi32>
    %13 = arith.cmpi ne, %4, %12 : vector<64x1xi32>
    %c63_i32 = arith.constant 63 : i32
    %14 = tpu.dynamic_rotate %1 by %c63_i32 dim 0 : vector<64x4xf32>, i32 -> vector<64x4xf32>
    %cst_2 = arith.constant 0.000000e+00 : f32
    %15 = vector.shape_cast %13 : vector<64x1xi1> to vector<64x1xi1>
    %16 = vector.broadcast %15 : vector<64x1xi1> to vector<64x4xi1>
    %17 = vector.broadcast %cst_2 : f32 to vector<64x4xf32>
    %18 = arith.select %16, %14, %17 : vector<64x4xi1>, vector<64x4xf32>
    %19 = arith.truncf %11 : vector<64x4xf32> to vector<64x4xbf16>
    %c0_3 = arith.constant 0 : index
    %c0_4 = arith.constant 0 : index
    %c0_5 = arith.constant 0 : index
    %20 = vector.load %arg2[%c0_3, %c0_4, %c0_5] : memref<3x4x64xbf16, #tpu.memory_space<vmem>>, vector<1x4x64xbf16>
    %21 = vector.shape_cast %20 : vector<1x4x64xbf16> to vector<4x64xbf16>
    %cst_6 = arith.constant dense<0.000000e+00> : vector<64x64xf32>
    %22 = tpu.matmul %19, %21, %cst_6 {dimension_numbers = #tpu.dot_dimension_numbers<[1], [0], [0], [1], [0, 0, 1, 1], [], []>} : vector<64x4xbf16>, vector<4x64xbf16>, vector<64x64xf32> -> vector<64x64xf32>
    %23 = arith.truncf %1 : vector<64x4xf32> to vector<64x4xbf16>
    %c1 = arith.constant 1 : index
    %c0_7 = arith.constant 0 : index
    %c0_8 = arith.constant 0 : index
    %24 = vector.load %arg2[%c1, %c0_7, %c0_8] : memref<3x4x64xbf16, #tpu.memory_space<vmem>>, vector<1x4x64xbf16>
    %25 = vector.shape_cast %24 : vector<1x4x64xbf16> to vector<4x64xbf16>
    %cst_9 = arith.constant dense<0.000000e+00> : vector<64x64xf32>
    %26 = tpu.matmul %23, %25, %cst_9 {dimension_numbers = #tpu.dot_dimension_numbers<[1], [0], [0], [1], [0, 0, 1, 1], [], []>} : vector<64x4xbf16>, vector<4x64xbf16>, vector<64x64xf32> -> vector<64x64xf32>
    %27 = arith.addf %22, %26 : vector<64x64xf32>
    %28 = arith.truncf %18 : vector<64x4xf32> to vector<64x4xbf16>
    %c2 = arith.constant 2 : index
    %c0_10 = arith.constant 0 : index
    %c0_11 = arith.constant 0 : index
    %29 = vector.load %arg2[%c2, %c0_10, %c0_11] : memref<3x4x64xbf16, #tpu.memory_space<vmem>>, vector<1x4x64xbf16>
    %30 = vector.shape_cast %29 : vector<1x4x64xbf16> to vector<4x64xbf16>
    %cst_12 = arith.constant dense<0.000000e+00> : vector<64x64xf32>
    %31 = tpu.matmul %28, %30, %cst_12 {dimension_numbers = #tpu.dot_dimension_numbers<[1], [0], [0], [1], [0, 0, 1, 1], [], []>} : vector<64x4xbf16>, vector<4x64xbf16>, vector<64x64xf32> -> vector<64x64xf32>
    %32 = arith.addf %27, %31 : vector<64x64xf32>
    %c0_13 = arith.constant 0 : index
    %c0_14 = arith.constant 0 : index
    %33 = vector.load %arg3[%c0_13, %c0_14] : memref<1x64xf32, #tpu.memory_space<vmem>>, vector<1x64xf32>
    %34 = vector.broadcast %33 : vector<1x64xf32> to vector<64x64xf32>
    %35 = arith.addf %32, %34 : vector<64x64xf32>
    %cst_15 = arith.constant 0.000000e+00 : f32
    %36 = vector.broadcast %cst_15 : f32 to vector<64x64xf32>
    %37 = arith.maximumf %35, %36 : vector<64x64xf32>
    %38 = vector.shape_cast %37 : vector<64x64xf32> to vector<32x2x64xf32>
    %cst_16 = arith.constant dense<0xFF800000> : vector<32x64xf32>
    %39 = vector.multi_reduction <maximumf>, %38, %cst_16 [1] : vector<32x2x64xf32> to vector<32x64xf32>
    %40 = tpu.iota {dimensions = array<i32: 0>} : vector<32x1xi32>
    %c3_i32 = arith.constant 3 : i32
    %41 = vector.broadcast %c3_i32 : i32 to vector<32x1xi32>
    %42 = arith.andi %40, %41 : vector<32x1xi32>
    %c0_i32_17 = arith.constant 0 : i32
    %43 = vector.broadcast %c0_i32_17 : i32 to vector<32x1xi32>
    %44 = arith.cmpi ne, %42, %43 : vector<32x1xi32>
    %c1_i32_18 = arith.constant 1 : i32
    %45 = tpu.dynamic_rotate %39 by %c1_i32_18 dim 0 : vector<32x64xf32>, i32 -> vector<32x64xf32>
    %cst_19 = arith.constant 0.000000e+00 : f32
    %46 = vector.shape_cast %44 : vector<32x1xi1> to vector<32x1xi1>
    %47 = vector.broadcast %46 : vector<32x1xi1> to vector<32x64xi1>
    %48 = vector.broadcast %cst_19 : f32 to vector<32x64xf32>
    %49 = arith.select %47, %45, %48 : vector<32x64xi1>, vector<32x64xf32>
    %c3_i32_20 = arith.constant 3 : i32
    %50 = vector.broadcast %c3_i32_20 : i32 to vector<32x1xi32>
    %51 = arith.cmpi ne, %42, %50 : vector<32x1xi32>
    %c31_i32 = arith.constant 31 : i32
    %52 = tpu.dynamic_rotate %39 by %c31_i32 dim 0 : vector<32x64xf32>, i32 -> vector<32x64xf32>
    %cst_21 = arith.constant 0.000000e+00 : f32
    %53 = vector.shape_cast %51 : vector<32x1xi1> to vector<32x1xi1>
    %54 = vector.broadcast %53 : vector<32x1xi1> to vector<32x64xi1>
    %55 = vector.broadcast %cst_21 : f32 to vector<32x64xf32>
    %56 = arith.select %54, %52, %55 : vector<32x64xi1>, vector<32x64xf32>
    %57 = arith.truncf %49 : vector<32x64xf32> to vector<32x64xbf16>
    %c0_22 = arith.constant 0 : index
    %c0_23 = arith.constant 0 : index
    %c0_24 = arith.constant 0 : index
    %58 = vector.load %arg4[%c0_22, %c0_23, %c0_24] : memref<3x64x128xbf16, #tpu.memory_space<vmem>>, vector<1x64x128xbf16>
    %59 = vector.shape_cast %58 : vector<1x64x128xbf16> to vector<64x128xbf16>
    %cst_25 = arith.constant dense<0.000000e+00> : vector<32x128xf32>
    %60 = tpu.matmul %57, %59, %cst_25 {dimension_numbers = #tpu.dot_dimension_numbers<[1], [0], [0], [1], [0, 0, 1, 1], [], []>} : vector<32x64xbf16>, vector<64x128xbf16>, vector<32x128xf32> -> vector<32x128xf32>
    %61 = arith.truncf %39 : vector<32x64xf32> to vector<32x64xbf16>
    %c1_26 = arith.constant 1 : index
    %c0_27 = arith.constant 0 : index
    %c0_28 = arith.constant 0 : index
    %62 = vector.load %arg4[%c1_26, %c0_27, %c0_28] : memref<3x64x128xbf16, #tpu.memory_space<vmem>>, vector<1x64x128xbf16>
    %63 = vector.shape_cast %62 : vector<1x64x128xbf16> to vector<64x128xbf16>
    %cst_29 = arith.constant dense<0.000000e+00> : vector<32x128xf32>
    %64 = tpu.matmul %61, %63, %cst_29 {dimension_numbers = #tpu.dot_dimension_numbers<[1], [0], [0], [1], [0, 0, 1, 1], [], []>} : vector<32x64xbf16>, vector<64x128xbf16>, vector<32x128xf32> -> vector<32x128xf32>
    %65 = arith.addf %60, %64 : vector<32x128xf32>
    %66 = arith.truncf %56 : vector<32x64xf32> to vector<32x64xbf16>
    %c2_30 = arith.constant 2 : index
    %c0_31 = arith.constant 0 : index
    %c0_32 = arith.constant 0 : index
    %67 = vector.load %arg4[%c2_30, %c0_31, %c0_32] : memref<3x64x128xbf16, #tpu.memory_space<vmem>>, vector<1x64x128xbf16>
    %68 = vector.shape_cast %67 : vector<1x64x128xbf16> to vector<64x128xbf16>
    %cst_33 = arith.constant dense<0.000000e+00> : vector<32x128xf32>
    %69 = tpu.matmul %66, %68, %cst_33 {dimension_numbers = #tpu.dot_dimension_numbers<[1], [0], [0], [1], [0, 0, 1, 1], [], []>} : vector<32x64xbf16>, vector<64x128xbf16>, vector<32x128xf32> -> vector<32x128xf32>
    %70 = arith.addf %65, %69 : vector<32x128xf32>
    %c0_34 = arith.constant 0 : index
    %c0_35 = arith.constant 0 : index
    %71 = vector.load %arg5[%c0_34, %c0_35] : memref<1x128xf32, #tpu.memory_space<vmem>>, vector<1x128xf32>
    %72 = vector.broadcast %71 : vector<1x128xf32> to vector<32x128xf32>
    %73 = arith.addf %70, %72 : vector<32x128xf32>
    %cst_36 = arith.constant 0.000000e+00 : f32
    %74 = vector.broadcast %cst_36 : f32 to vector<32x128xf32>
    %75 = arith.maximumf %73, %74 : vector<32x128xf32>
    %76 = vector.shape_cast %75 : vector<32x128xf32> to vector<16x2x128xf32>
    %cst_37 = arith.constant dense<0xFF800000> : vector<16x128xf32>
    %77 = vector.multi_reduction <maximumf>, %76, %cst_37 [1] : vector<16x2x128xf32> to vector<16x128xf32>
    %78 = tpu.iota {dimensions = array<i32: 0>} : vector<16x1xi32>
    %c1_i32_38 = arith.constant 1 : i32
    %79 = vector.broadcast %c1_i32_38 : i32 to vector<16x1xi32>
    %80 = arith.andi %78, %79 : vector<16x1xi32>
    %c0_i32_39 = arith.constant 0 : i32
    %81 = vector.broadcast %c0_i32_39 : i32 to vector<16x1xi32>
    %82 = arith.cmpi ne, %80, %81 : vector<16x1xi32>
    %c1_i32_40 = arith.constant 1 : i32
    %83 = tpu.dynamic_rotate %77 by %c1_i32_40 dim 0 : vector<16x128xf32>, i32 -> vector<16x128xf32>
    %cst_41 = arith.constant 0.000000e+00 : f32
    %84 = vector.shape_cast %82 : vector<16x1xi1> to vector<16x1xi1>
    %85 = vector.broadcast %84 : vector<16x1xi1> to vector<16x128xi1>
    %86 = vector.broadcast %cst_41 : f32 to vector<16x128xf32>
    %87 = arith.select %85, %83, %86 : vector<16x128xi1>, vector<16x128xf32>
    %c1_i32_42 = arith.constant 1 : i32
    %88 = vector.broadcast %c1_i32_42 : i32 to vector<16x1xi32>
    %89 = arith.cmpi ne, %80, %88 : vector<16x1xi32>
    %c15_i32 = arith.constant 15 : i32
    %90 = tpu.dynamic_rotate %77 by %c15_i32 dim 0 : vector<16x128xf32>, i32 -> vector<16x128xf32>
    %cst_43 = arith.constant 0.000000e+00 : f32
    %91 = vector.shape_cast %89 : vector<16x1xi1> to vector<16x1xi1>
    %92 = vector.broadcast %91 : vector<16x1xi1> to vector<16x128xi1>
    %93 = vector.broadcast %cst_43 : f32 to vector<16x128xf32>
    %94 = arith.select %92, %90, %93 : vector<16x128xi1>, vector<16x128xf32>
    %95 = arith.truncf %87 : vector<16x128xf32> to vector<16x128xbf16>
    %c0_44 = arith.constant 0 : index
    %c0_45 = arith.constant 0 : index
    %c0_46 = arith.constant 0 : index
    %96 = vector.load %arg6[%c0_44, %c0_45, %c0_46] : memref<3x128x256xbf16, #tpu.memory_space<vmem>>, vector<1x128x256xbf16>
    %97 = vector.shape_cast %96 : vector<1x128x256xbf16> to vector<128x256xbf16>
    %cst_47 = arith.constant dense<0.000000e+00> : vector<16x256xf32>
    %98 = tpu.matmul %95, %97, %cst_47 {dimension_numbers = #tpu.dot_dimension_numbers<[1], [0], [0], [1], [0, 0, 1, 1], [], []>} : vector<16x128xbf16>, vector<128x256xbf16>, vector<16x256xf32> -> vector<16x256xf32>
    %99 = arith.truncf %77 : vector<16x128xf32> to vector<16x128xbf16>
    %c1_48 = arith.constant 1 : index
    %c0_49 = arith.constant 0 : index
    %c0_50 = arith.constant 0 : index
    %100 = vector.load %arg6[%c1_48, %c0_49, %c0_50] : memref<3x128x256xbf16, #tpu.memory_space<vmem>>, vector<1x128x256xbf16>
    %101 = vector.shape_cast %100 : vector<1x128x256xbf16> to vector<128x256xbf16>
    %cst_51 = arith.constant dense<0.000000e+00> : vector<16x256xf32>
    %102 = tpu.matmul %99, %101, %cst_51 {dimension_numbers = #tpu.dot_dimension_numbers<[1], [0], [0], [1], [0, 0, 1, 1], [], []>} : vector<16x128xbf16>, vector<128x256xbf16>, vector<16x256xf32> -> vector<16x256xf32>
    %103 = arith.addf %98, %102 : vector<16x256xf32>
    %104 = arith.truncf %94 : vector<16x128xf32> to vector<16x128xbf16>
    %c2_52 = arith.constant 2 : index
    %c0_53 = arith.constant 0 : index
    %c0_54 = arith.constant 0 : index
    %105 = vector.load %arg6[%c2_52, %c0_53, %c0_54] : memref<3x128x256xbf16, #tpu.memory_space<vmem>>, vector<1x128x256xbf16>
    %106 = vector.shape_cast %105 : vector<1x128x256xbf16> to vector<128x256xbf16>
    %cst_55 = arith.constant dense<0.000000e+00> : vector<16x256xf32>
    %107 = tpu.matmul %104, %106, %cst_55 {dimension_numbers = #tpu.dot_dimension_numbers<[1], [0], [0], [1], [0, 0, 1, 1], [], []>} : vector<16x128xbf16>, vector<128x256xbf16>, vector<16x256xf32> -> vector<16x256xf32>
    %108 = arith.addf %103, %107 : vector<16x256xf32>
    %c0_56 = arith.constant 0 : index
    %c0_57 = arith.constant 0 : index
    %109 = vector.load %arg7[%c0_56, %c0_57] : memref<1x256xf32, #tpu.memory_space<vmem>>, vector<1x256xf32>
    %110 = vector.broadcast %109 : vector<1x256xf32> to vector<16x256xf32>
    %111 = arith.addf %108, %110 : vector<16x256xf32>
    %cst_58 = arith.constant 0.000000e+00 : f32
    %112 = vector.broadcast %cst_58 : f32 to vector<16x256xf32>
    %113 = arith.maximumf %111, %112 : vector<16x256xf32>
    %114 = vector.shape_cast %113 : vector<16x256xf32> to vector<8x2x256xf32>
    %cst_59 = arith.constant dense<0xFF800000> : vector<8x256xf32>
    %115 = vector.multi_reduction <maximumf>, %114, %cst_59 [1] : vector<8x2x256xf32> to vector<8x256xf32>
    %116 = arith.truncf %115 : vector<8x256xf32> to vector<8x256xbf16>
    %c0_60 = arith.constant 0 : index
    %c0_61 = arith.constant 0 : index
    %117 = vector.load %arg8[%c0_60, %c0_61] : memref<256x128xbf16, #tpu.memory_space<vmem>>, vector<256x128xbf16>
    %cst_62 = arith.constant dense<0.000000e+00> : vector<8x128xf32>
    %118 = tpu.matmul %116, %117, %cst_62 {dimension_numbers = #tpu.dot_dimension_numbers<[1], [0], [0], [1], [0, 0, 1, 1], [], []>} : vector<8x256xbf16>, vector<256x128xbf16>, vector<8x128xf32> -> vector<8x128xf32>
    %c0_63 = arith.constant 0 : index
    %c0_64 = arith.constant 0 : index
    %119 = vector.load %arg9[%c0_63, %c0_64] : memref<1x128xf32, #tpu.memory_space<vmem>>, vector<1x128xf32>
    %120 = vector.broadcast %119 : vector<1x128xf32> to vector<8x128xf32>
    %121 = arith.addf %118, %120 : vector<8x128xf32>
    %cst_65 = arith.constant 0.000000e+00 : f32
    %122 = vector.broadcast %cst_65 : f32 to vector<8x128xf32>
    %123 = arith.maximumf %121, %122 : vector<8x128xf32>
    %124 = arith.truncf %123 : vector<8x128xf32> to vector<8x128xbf16>
    %c0_66 = arith.constant 0 : index
    %c0_67 = arith.constant 0 : index
    %125 = vector.load %arg10[%c0_66, %c0_67] : memref<128x64xbf16, #tpu.memory_space<vmem>>, vector<128x64xbf16>
    %cst_68 = arith.constant dense<0.000000e+00> : vector<8x64xf32>
    %126 = tpu.matmul %124, %125, %cst_68 {dimension_numbers = #tpu.dot_dimension_numbers<[1], [0], [0], [1], [0, 0, 1, 1], [], []>} : vector<8x128xbf16>, vector<128x64xbf16>, vector<8x64xf32> -> vector<8x64xf32>
    %c0_69 = arith.constant 0 : index
    %c0_70 = arith.constant 0 : index
    %127 = vector.load %arg11[%c0_69, %c0_70] : memref<1x64xf32, #tpu.memory_space<vmem>>, vector<1x64xf32>
    %128 = vector.broadcast %127 : vector<1x64xf32> to vector<8x64xf32>
    %129 = arith.addf %126, %128 : vector<8x64xf32>
    %cst_71 = arith.constant 0.000000e+00 : f32
    %130 = vector.broadcast %cst_71 : f32 to vector<8x64xf32>
    %131 = arith.maximumf %129, %130 : vector<8x64xf32>
    %132 = arith.truncf %131 : vector<8x64xf32> to vector<8x64xbf16>
    %c0_72 = arith.constant 0 : index
    %c0_73 = arith.constant 0 : index
    %133 = vector.load %arg12[%c0_72, %c0_73] : memref<64x128xbf16, #tpu.memory_space<vmem>>, vector<64x128xbf16>
    %cst_74 = arith.constant dense<0.000000e+00> : vector<8x128xf32>
    %134 = tpu.matmul %132, %133, %cst_74 {dimension_numbers = #tpu.dot_dimension_numbers<[1], [0], [0], [1], [0, 0, 1, 1], [], []>} : vector<8x64xbf16>, vector<64x128xbf16>, vector<8x128xf32> -> vector<8x128xf32>
    %c0_75 = arith.constant 0 : index
    %c0_76 = arith.constant 0 : index
    %135 = vector.load %arg13[%c0_75, %c0_76] : memref<1x128xf32, #tpu.memory_space<vmem>>, vector<1x128xf32>
    %136 = vector.broadcast %135 : vector<1x128xf32> to vector<8x128xf32>
    %137 = arith.addf %134, %136 : vector<8x128xf32>
    %138 = arith.truncf %137 : vector<8x128xf32> to vector<8x128xbf16>
    %c0_77 = arith.constant 0 : index
    %c0_78 = arith.constant 0 : index
    %139 = vector.load %arg14[%c0_77, %c0_78] : memref<8x128xbf16, #tpu.memory_space<vmem>>, vector<8x128xbf16>
    tpu.vector_store %arg14[%c0_77, %c0_78], %138 {strides = array<i32>} : memref<8x128xbf16, #tpu.memory_space<vmem>>, vector<8x128xbf16>,
    return
  }
  func.func @transform_0(%arg0: i32) -> (i32, i32) {
    %c0_i32 = arith.constant 0 : i32
    %c0_i32_0 = arith.constant 0 : i32
    return %arg0, %c0_i32 : i32, i32
  }
  func.func @transform_1(%arg0: i32) -> (i32, i32, i32) {
    %c0_i32 = arith.constant 0 : i32
    %c0_i32_0 = arith.constant 0 : i32
    %c0_i32_1 = arith.constant 0 : i32
    %c0_i32_2 = arith.constant 0 : i32
    return %c0_i32, %c0_i32_0, %c0_i32_1 : i32, i32, i32
  }
  func.func @transform_2(%arg0: i32) -> (i32, i32) {
    %c0_i32 = arith.constant 0 : i32
    %c0_i32_0 = arith.constant 0 : i32
    %c0_i32_1 = arith.constant 0 : i32
    return %c0_i32, %c0_i32_0 : i32, i32
  }
  func.func @transform_3(%arg0: i32) -> (i32, i32, i32) {
    %c0_i32 = arith.constant 0 : i32
    %c0_i32_0 = arith.constant 0 : i32
    %c0_i32_1 = arith.constant 0 : i32
    %c0_i32_2 = arith.constant 0 : i32
    return %c0_i32, %c0_i32_0, %c0_i32_1 : i32, i32, i32
  }
  func.func @transform_4(%arg0: i32) -> (i32, i32) {
    %c0_i32 = arith.constant 0 : i32
    %c0_i32_0 = arith.constant 0 : i32
    %c0_i32_1 = arith.constant 0 : i32
    return %c0_i32, %c0_i32_0 : i32, i32
  }
  func.func @transform_5(%arg0: i32) -> (i32, i32, i32) {
    %c0_i32 = arith.constant 0 : i32
    %c0_i32_0 = arith.constant 0 : i32
    %c0_i32_1 = arith.constant 0 : i32
    %c0_i32_2 = arith.constant 0 : i32
    return %c0_i32, %c0_i32_0, %c0_i32_1 : i32, i32, i32
  }
  func.func @transform_6(%arg0: i32) -> (i32, i32) {
    %c0_i32 = arith.constant 0 : i32
    %c0_i32_0 = arith.constant 0 : i32
    %c0_i32_1 = arith.constant 0 : i32
    return %c0_i32, %c0_i32_0 : i32, i32
  }
  func.func @transform_7(%arg0: i32) -> (i32, i32) {
    %c0_i32 = arith.constant 0 : i32
    %c0_i32_0 = arith.constant 0 : i32
    %c0_i32_1 = arith.constant 0 : i32
    return %c0_i32, %c0_i32_0 : i32, i32
  }
  func.func @transform_8(%arg0: i32) -> (i32, i32) {
    %c0_i32 = arith.constant 0 : i32
    %c0_i32_0 = arith.constant 0 : i32
    %c0_i32_1 = arith.constant 0 : i32
    return %c0_i32, %c0_i32_0 : i32, i32
  }
  func.func @transform_9(%arg0: i32) -> (i32, i32) {
    %c0_i32 = arith.constant 0 : i32
    %c0_i32_0 = arith.constant 0 : i32
    %c0_i32_1 = arith.constant 0 : i32
    return %c0_i32, %c0_i32_0 : i32, i32
  }
  func.func @transform_10(%arg0: i32) -> (i32, i32) {
    %c0_i32 = arith.constant 0 : i32
    %c0_i32_0 = arith.constant 0 : i32
    %c0_i32_1 = arith.constant 0 : i32
    return %c0_i32, %c0_i32_0 : i32, i32
  }
  func.func @transform_11(%arg0: i32) -> (i32, i32) {
    %c0_i32 = arith.constant 0 : i32
    %c0_i32_0 = arith.constant 0 : i32
    %c0_i32_1 = arith.constant 0 : i32
    return %c0_i32, %c0_i32_0 : i32, i32
  }
  func.func @transform_12(%arg0: i32) -> (i32, i32) {
    %c0_i32 = arith.constant 0 : i32
    %c0_i32_0 = arith.constant 0 : i32
    %c0_i32_1 = arith.constant 0 : i32
    return %c0_i32, %c0_i32_0 : i32, i32
  }
  func.func @transform_13(%arg0: i32) -> (i32, i32) {
    %c0_i32 = arith.constant 0 : i32
    %c0_i32_0 = arith.constant 0 : i32
    return %arg0, %c0_i32 : i32, i32
  }
}

</mosaic_0001>

<llo_original>
// kernel: tpu_custom_call.1
$region0: #{tpu_custom_call.1}
  #allocation0 [shape = 'u32[]', space=smem, size = 0x4, offset = 0x4, fixed_abs, tag = 'smem constant byte address 0x4 - core index']
  #allocation1 [shape = 'u32[72,128]{1,0:T(1,128)}', space=vmem, size = 0x9000, scoped, tag = 'internal scratch']
  %s0 = inlined_call_operand.vmem [shape: bf16[64,4], index: 0, kind: input, shape index: {}]
  %s1 = inlined_call_operand.vmem [shape: bf16[3,4,64], index: 1, kind: input, shape index: {}]
  %s2 = inlined_call_operand.hbm [shape: f32[1,64], index: 2, kind: input, shape index: {}]
  %s3 = inlined_call_operand.hbm [shape: bf16[3,64,128], index: 3, kind: input, shape index: {}]
  %s4 = inlined_call_operand.hbm [shape: f32[1,128], index: 4, kind: input, shape index: {}]
  %s5 = inlined_call_operand.hbm [shape: bf16[3,128,256], index: 5, kind: input, shape index: {}]
  %s6 = inlined_call_operand.vmem [shape: f32[1,256], index: 6, kind: input, shape index: {}]
  %s7 = inlined_call_operand.vmem [shape: bf16[256,128], index: 7, kind: input, shape index: {}]
  %s8 = inlined_call_operand.vmem [shape: f32[1,128], index: 8, kind: input, shape index: {}]
  %s9 = inlined_call_operand.vmem [shape: bf16[128,64], index: 9, kind: input, shape index: {}]
  %s10 = inlined_call_operand.vmem [shape: f32[1,64], index: 10, kind: input, shape index: {}]
  %s11 = inlined_call_operand.hbm [shape: bf16[64,128], index: 11, kind: input, shape index: {}]
  %s12 = inlined_call_operand.vmem [shape: f32[1,128], index: 12, kind: input, shape index: {}]
  %s13 = inlined_call_operand.hbm [shape: bf16[8,128], index: 13, kind: output, shape index: {}]
  %s14 = sld [smem:[#allocation0]]
  $region82: #{tpu_custom_call.1} parent=0
    _
  %s16 = ssub.s32 1, %s14
  %s17 = scalar_select 0, %s16, %s14
  $region1: #{tpu_custom_call.1} parent=0
    #allocation2 [shape = 'u8[512]{0}', space=vmem, size = 0x400, scoped, tag = 'input window, operand 2, single buffered']
    #allocation3 [shape = 's32[1]{0}', space=sflag, size = 0x4, scoped, tag = 'scoped memory for tpu_custom_call.1']
    #allocation4 [shape = 's32[1]{0}', space=sflag, size = 0x4, scoped, tag = 'scoped memory for tpu_custom_call.1']
    #allocation5 [shape = 'u8[49152]{0}', space=vmem, size = 0xc000, scoped, tag = 'input window, operand 3, single buffered']
    #allocation6 [shape = 's32[1]{0}', space=sflag, size = 0x4, scoped, tag = 'scoped memory for tpu_custom_call.1']
    #allocation7 [shape = 'u8[512]{0}', space=vmem, size = 0x400, scoped, tag = 'input window, operand 4, single buffered']
    #allocation8 [shape = 'u8[196608]{0}', space=vmem, size = 0x30000, scoped, tag = 'input window, operand 5, single buffered']
    #allocation9 [shape = 's32[1]{0}', space=sflag, size = 0x4, scoped, tag = 'scoped memory for tpu_custom_call.1']
    #allocation10 [shape = 'u8[16384]{0}', space=vmem, size = 0x4000, scoped, tag = 'input window, operand 11, single buffered']
    #allocation11 [shape = 'u8[2048]{0}', space=vmem, size = 0x800, scoped, tag = 'output window, operand 0, single buffered']
    %18 = vsyncpa [#allocation3], 0
    %19 = vsyncpa [#allocation6], 0
    %20 = vsyncpa [#allocation9], 0
    %21 = vsyncpa [#allocation4], 0
    // Predicated region
    $region2: #{tpu_custom_call.1} parent=1 // pred_check
      _
    $region3: #{tpu_custom_call.1} parent=1 // pred_check_branch
      %23 = sbr.rel (0) target = $region5
    $region4: #{tpu_custom_call.1} parent=1 // pred_region
      _
    $region5: #{tpu_custom_call.1} parent=1 // pred_fallthru
      _
    // Predicated region
    $region6: #{tpu_custom_call.1} parent=1 // pred_check
      _
    $region7: #{tpu_custom_call.1} parent=1 // pred_check_branch
      %25 = sbr.rel (0) target = $region9
    $region8: #{tpu_custom_call.1} parent=1 // pred_region
      _
    $region9: #{tpu_custom_call.1} parent=1 // pred_fallthru
      _
    // Predicated region
    $region10: #{tpu_custom_call.1} parent=1 // pred_check
      _
    $region11: #{tpu_custom_call.1} parent=1 // pred_check_branch
      %27 = sbr.rel (0) target = $region13
    $region12: #{tpu_custom_call.1} parent=1 // pred_region
      %29 = vsyncadd [#allocation3], 0
      %s31 = sshll.u32 %s2, 4
      %s32 = int_to_ptr.hbm [resolvable:$true] %s31
      %s33 = sshll.u32 [#allocation2], 4
      %s34 = int_to_ptr.vmem [resolvable:$true] %s33
      %36 = dma.hbm_to_vmem [thread:$0]  %s32, 16, %s34, [#allocation3]
    $region13: #{tpu_custom_call.1} parent=1 // pred_fallthru
      _
    // Predicated region
    $region14: #{tpu_custom_call.1} parent=1 // pred_check
      _
    $region15: #{tpu_custom_call.1} parent=1 // pred_check_branch
      %38 = sbr.rel (0) target = $region17
    $region16: #{tpu_custom_call.1} parent=1 // pred_region
      %40 = vsyncadd [#allocation6], 0
      %s41 = sshll.u32 %s3, 4
      %s42 = int_to_ptr.hbm [resolvable:$true] %s41
      %s43 = sshll.u32 [#allocation5], 4
      %s44 = int_to_ptr.vmem [resolvable:$true] %s43
      %49 = dma.hbm_to_vmem [thread:$0]  %s42, 1536, %s44, [#allocation6], 64, 64, 4
    $region17: #{tpu_custom_call.1} parent=1 // pred_fallthru
      _
    // Predicated region
    $region18: #{tpu_custom_call.1} parent=1 // pred_check
      _
    $region19: #{tpu_custom_call.1} parent=1 // pred_check_branch
      %51 = sbr.rel (0) target = $region21
    $region20: #{tpu_custom_call.1} parent=1 // pred_region
      %53 = vsyncadd [#allocation6], 0
      %s55 = sshll.u32 %s4, 4
      %s56 = int_to_ptr.hbm [resolvable:$true] %s55
      %s57 = sshll.u32 [#allocation7], 4
      %s58 = int_to_ptr.vmem [resolvable:$true] %s57
      %60 = dma.hbm_to_vmem [thread:$0]  %s56, 16, %s58, [#allocation6]
    $region21: #{tpu_custom_call.1} parent=1 // pred_fallthru
      _
    // Predicated region
    $region22: #{tpu_custom_call.1} parent=1 // pred_check
      _
    $region23: #{tpu_custom_call.1} parent=1 // pred_check_branch
      %62 = sbr.rel (0) target = $region25
    $region24: #{tpu_custom_call.1} parent=1 // pred_region
      %64 = vsyncadd [#allocation9], 0
      %s65 = sshll.u32 %s5, 4
      %s66 = int_to_ptr.hbm [resolvable:$true] %s65
      %s67 = sshll.u32 [#allocation8], 4
      %s68 = int_to_ptr.vmem [resolvable:$true] %s67
      %73 = dma.hbm_to_vmem [thread:$0]  %s66, 6144, %s68, [#allocation9], 128, 128, 8
    $region25: #{tpu_custom_call.1} parent=1 // pred_fallthru
      _
    // Predicated region
    $region26: #{tpu_custom_call.1} parent=1 // pred_check
      _
    $region27: #{tpu_custom_call.1} parent=1 // pred_check_branch
      %75 = sbr.rel (0) target = $region29
    $region28: #{tpu_custom_call.1} parent=1 // pred_region
      _
    $region29: #{tpu_custom_call.1} parent=1 // pred_fallthru
      _
    // Predicated region
    $region30: #{tpu_custom_call.1} parent=1 // pred_check
      _
    $region31: #{tpu_custom_call.1} parent=1 // pred_check_branch
      %77 = sbr.rel (0) target = $region33
    $region32: #{tpu_custom_call.1} parent=1 // pred_region
      _
    $region33: #{tpu_custom_call.1} parent=1 // pred_fallthru
      _
    // Predicated region
    $region34: #{tpu_custom_call.1} parent=1 // pred_check
      _
    $region35: #{tpu_custom_call.1} parent=1 // pred_check_branch
      %79 = sbr.rel (0) target = $region37
    $region36: #{tpu_custom_call.1} parent=1 // pred_region
      _
    $region37: #{tpu_custom_call.1} parent=1 // pred_fallthru
      _
    // Predicated region
    $region38: #{tpu_custom_call.1} parent=1 // pred_check
      _
    $region39: #{tpu_custom_call.1} parent=1 // pred_check_branch
      %81 = sbr.rel (0) target = $region41
    $region40: #{tpu_custom_call.1} parent=1 // pred_region
      _
    $region41: #{tpu_custom_call.1} parent=1 // pred_fallthru
      _
    // Predicated region
    $region42: #{tpu_custom_call.1} parent=1 // pred_check
      _
    $region43: #{tpu_custom_call.1} parent=1 // pred_check_branch
      %83 = sbr.rel (0) target = $region45
    $region44: #{tpu_custom_call.1} parent=1 // pred_region
      _
    $region45: #{tpu_custom_call.1} parent=1 // pred_fallthru
      _
    // Predicated region
    $region46: #{tpu_custom_call.1} parent=1 // pred_check
      _
    $region47: #{tpu_custom_call.1} parent=1 // pred_check_branch
      %85 = sbr.rel (0) target = $region49
    $region48: #{tpu_custom_call.1} parent=1 // pred_region
      %87 = vsyncadd [#allocation9], 0
      %s88 = sshll.u32 %s11, 4
      %s89 = int_to_ptr.hbm [resolvable:$true] %s88
      %s90 = sshll.u32 [#allocation10], 4
      %s91 = int_to_ptr.vmem [resolvable:$true] %s90
      %96 = dma.hbm_to_vmem [thread:$0]  %s89, 512, %s91, [#allocation9], 64, 64, 4
    $region49: #{tpu_custom_call.1} parent=1 // pred_fallthru
      _
    // Predicated region
    $region50: #{tpu_custom_call.1} parent=1 // pred_check
      _
    $region51: #{tpu_custom_call.1} parent=1 // pred_check_branch
      %98 = sbr.rel (0) target = $region53
    $region52: #{tpu_custom_call.1} parent=1 // pred_region
      _
    $region53: #{tpu_custom_call.1} parent=1 // pred_fallthru
      _
    // Predicated region
    $region54: #{tpu_custom_call.1} parent=1 // pred_check
      _
    $region55: #{tpu_custom_call.1} parent=1 // pred_check_branch
      %100 = sbr.rel (0) target = $region57
    $region56: #{tpu_custom_call.1} parent=1 // pred_region
      %102 = dma.done [#allocation3], 16
    $region57: #{tpu_custom_call.1} parent=1 // pred_fallthru
      _
    // Predicated region
    $region58: #{tpu_custom_call.1} parent=1 // pred_check
      _
    $region59: #{tpu_custom_call.1} parent=1 // pred_check_branch
      %104 = sbr.rel (0) target = $region61
    $region60: #{tpu_custom_call.1} parent=1 // pred_region
      %106 = dma.done [#allocation6], 1536
    $region61: #{tpu_custom_call.1} parent=1 // pred_fallthru
      _
    // Predicated region
    $region62: #{tpu_custom_call.1} parent=1 // pred_check
      _
    $region63: #{tpu_custom_call.1} parent=1 // pred_check_branch
      %108 = sbr.rel (0) target = $region65
    $region64: #{tpu_custom_call.1} parent=1 // pred_region
      %110 = dma.done [#allocation6], 16
    $region65: #{tpu_custom_call.1} parent=1 // pred_fallthru
      _
    // Predicated region
    $region66: #{tpu_custom_call.1} parent=1 // pred_check
      _
    $region67: #{tpu_custom_call.1} parent=1 // pred_check_branch
      %112 = sbr.rel (0) target = $region69
    $region68: #{tpu_custom_call.1} parent=1 // pred_region
      %114 = dma.done [#allocation9], 6144
    $region69: #{tpu_custom_call.1} parent=1 // pred_fallthru
      _
    // Predicated region
    $region70: #{tpu_custom_call.1} parent=1 // pred_check
      _
    $region71: #{tpu_custom_call.1} parent=1 // pred_check_branch
      %116 = sbr.rel (0) target = $region73
    $region72: #{tpu_custom_call.1} parent=1 // pred_region
      %118 = dma.done [#allocation9], 512
    $region73: #{tpu_custom_call.1} parent=1 // pred_fallthru
      _
    %v120 = vld [vmem:[%s0] sm:$0xf]
    %v121 = vld [vmem:[%s0 + $0x4] sm:$0xf]
    %v122 = vld [vmem:[%s0 + $0x8] sm:$0xf]
    %v123 = vld [vmem:[%s0 + $0xc] sm:$0xf]
    %v124 = vld [vmem:[%s0 + $0x10] sm:$0xf]
    %v125 = vld [vmem:[%s0 + $0x14] sm:$0xf]
    %v126 = vld [vmem:[%s0 + $0x18] sm:$0xf]
    %v127 = vld [vmem:[%s0 + $0x1c] sm:$0xf]
    %v128 = vunpack.c.l.bf16 %v120
    %v129 = vunpack.c.l.bf16 %v121
    %v130 = vunpack.c.l.bf16 %v122
    %v131 = vunpack.c.l.bf16 %v123
    %v132 = vunpack.c.l.bf16 %v124
    %v133 = vunpack.c.l.bf16 %v125
    %v134 = vunpack.c.l.bf16 %v126
    %v135 = vunpack.c.l.bf16 %v127
    %v136 = vlaneseq
    %v137 = vshrl.u32 %v136, 7
    %v138 = vadd.s32 %v137, 8
    %v139 = vadd.s32 %v137, 16
    %v140 = vadd.s32 %v137, 24
    %v141 = vadd.s32 %v137, 32
    %v142 = vadd.s32 %v137, 40
    %v143 = vadd.s32 %v137, 48
    %v144 = vadd.s32 %v137, 56
    %v145 = vand.u32 %v137, 7
    %v146 = vand.u32 %v138, 7
    %v147 = vand.u32 %v139, 7
    %v148 = vand.u32 %v140, 7
    %v149 = vand.u32 %v141, 7
    %v150 = vand.u32 %v142, 7
    %v151 = vand.u32 %v143, 7
    %v152 = vand.u32 %v144, 7
    %vm153 = vcmp.ne.s32.totalorder %v145, 0
    %vm154 = vcmp.ne.s32.totalorder %v146, 0
    %vm155 = vcmp.ne.s32.totalorder %v147, 0
    %vm156 = vcmp.ne.s32.totalorder %v148, 0
    %vm157 = vcmp.ne.s32.totalorder %v149, 0
    %vm158 = vcmp.ne.s32.totalorder %v150, 0
    %vm159 = vcmp.ne.s32.totalorder %v151, 0
    %vm160 = vcmp.ne.s32.totalorder %v152, 0
    %v161 = vrot.slane %v128, 7
    %v162 = vrot.slane %v129, 7
    %v163 = vrot.slane %v130, 7
    %v164 = vrot.slane %v131, 7
    %v165 = vrot.slane %v132, 7
    %v166 = vrot.slane %v133, 7
    %v167 = vrot.slane %v134, 7
    %v168 = vrot.slane %v135, 7
    %vm169 = vcmp.lt.s32.totalorder %v137, 1
    %v170 = vsel %vm169, %v167, %v168
    %v171 = vsel %vm169, %v166, %v167
    %v172 = vsel %vm169, %v165, %v166
    %v173 = vsel %vm169, %v164, %v165
    %v174 = vsel %vm169, %v163, %v164
    %v175 = vsel %vm169, %v162, %v163
    %v176 = vsel %vm169, %v161, %v162
    %v177 = vsel %vm169, %v168, %v161
    %v178 = vsel %vm153, 1, 0
    %v179 = vsel %vm154, 1, 0
    %v180 = vsel %vm155, 1, 0
    %v181 = vsel %vm156, 1, 0
    %v182 = vsel %vm157, 1, 0
    %v183 = vsel %vm158, 1, 0
    %v184 = vsel %vm159, 1, 0
    %v185 = vsel %vm160, 1, 0
    %vm186 = vcmp.eq.s32.totalorder %v178, 1
    %vm187 = vcmp.eq.s32.totalorder %v179, 1
    %vm188 = vcmp.eq.s32.totalorder %v180, 1
    %vm189 = vcmp.eq.s32.totalorder %v181, 1
    %vm190 = vcmp.eq.s32.totalorder %v182, 1
    %vm191 = vcmp.eq.s32.totalorder %v183, 1
    %vm192 = vcmp.eq.s32.totalorder %v184, 1
    %vm193 = vcmp.eq.s32.totalorder %v185, 1
    %v194 = vsel %vm186, %v177, 0.0
    %v195 = vsel %vm187, %v176, 0.0
    %v196 = vsel %vm188, %v175, 0.0
    %v197 = vsel %vm189, %v174, 0.0
    %v198 = vsel %vm190, %v173, 0.0
    %v199 = vsel %vm191, %v172, 0.0
    %v200 = vsel %vm192, %v171, 0.0
    %v201 = vsel %vm193, %v170, 0.0
    %vm202 = vcmp.ne.s32.totalorder %v145, 7
    %vm203 = vcmp.ne.s32.totalorder %v146, 7
    %vm204 = vcmp.ne.s32.totalorder %v147, 7
    %vm205 = vcmp.ne.s32.totalorder %v148, 7
    %vm206 = vcmp.ne.s32.totalorder %v149, 7
    %vm207 = vcmp.ne.s32.totalorder %v150, 7
    %vm208 = vcmp.ne.s32.totalorder %v151, 7
    %vm209 = vcmp.ne.s32.totalorder %v152, 7
    %v210 = vrot.slane %v128, 1
    %v211 = vrot.slane %v129, 1
    %v212 = vrot.slane %v130, 1
    %v213 = vrot.slane %v131, 1
    %v214 = vrot.slane %v132, 1
    %v215 = vrot.slane %v133, 1
    %v216 = vrot.slane %v134, 1
    %v217 = vrot.slane %v135, 1
    %vm218 = vcmp.lt.s32.totalorder %v137, 7
    %v219 = vsel %vm218, %v216, %v217
    %v220 = vsel %vm218, %v215, %v216
    %v221 = vsel %vm218, %v214, %v215
    %v222 = vsel %vm218, %v213, %v214
    %v223 = vsel %vm218, %v212, %v213
    %v224 = vsel %vm218, %v211, %v212
    %v225 = vsel %vm218, %v210, %v211
    %v226 = vsel %vm218, %v217, %v210
    %v227 = vsel %vm202, 1, 0
    %v228 = vsel %vm203, 1, 0
    %v229 = vsel %vm204, 1, 0
    %v230 = vsel %vm205, 1, 0
    %v231 = vsel %vm206, 1, 0
    %v232 = vsel %vm207, 1, 0
    %v233 = vsel %vm208, 1, 0
    %v234 = vsel %vm209, 1, 0
    %vm235 = vcmp.eq.s32.totalorder %v227, 1
    %vm236 = vcmp.eq.s32.totalorder %v228, 1
    %vm237 = vcmp.eq.s32.totalorder %v229, 1
    %vm238 = vcmp.eq.s32.totalorder %v230, 1
    %vm239 = vcmp.eq.s32.totalorder %v231, 1
    %vm240 = vcmp.eq.s32.totalorder %v232, 1
    %vm241 = vcmp.eq.s32.totalorder %v233, 1
    %vm242 = vcmp.eq.s32.totalorder %v234, 1
    %v243 = vsel %vm235, %v225, 0.0
    %v244 = vsel %vm236, %v224, 0.0
    %v245 = vsel %vm237, %v223, 0.0
    %v246 = vsel %vm238, %v222, 0.0
    %v247 = vsel %vm239, %v221, 0.0
    %v248 = vsel %vm240, %v220, 0.0
    %v249 = vsel %vm241, %v219, 0.0
    %v250 = vsel %vm242, %v226, 0.0
    %v251 = vpack.c.bf16 %v195, %v194
    %v252 = vpack.c.bf16 %v197, %v196
    %v253 = vpack.c.bf16 %v199, %v198
    %v254 = vpack.c.bf16 %v201, %v200
    %v255 = vld [vmem:[%s1] sm:$0x3]
    %s256 = scalar_lea.vmem %s1, 2
    %v257 = vld [vmem:[%s256] sm:$0x3]
    %v266 = vunpack.c.l.b16 %v120
    %v267 = vunpack.c.l.b16 %v121
    %v268 = vunpack.c.l.b16 %v122
    %v269 = vunpack.c.l.b16 %v123
    %v270 = vunpack.c.l.b16 %v124
    %v271 = vunpack.c.l.b16 %v125
    %v272 = vunpack.c.l.b16 %v126
    %v273 = vunpack.c.l.b16 %v127
    %v274 = vpack.c.b16 %v267, %v266
    %v275 = vpack.c.b16 %v269, %v268
    %v276 = vpack.c.b16 %v271, %v270
    %v277 = vpack.c.b16 %v273, %v272
    %vm278 = vcmask 31744
    %v280 = vsel %vm278, %v274, 0
    %v283 = vsel %vm278, %v275, 0
    %v286 = vsel %vm278, %v276, 0
    %v289 = vsel %vm278, %v277, 0
    %vm291 = vcmask 1041408
    %v293 = vsel %vm291, %v257, 0
    %295 = vmatpush.bf16.msra.mxu0 0
    %296 = vmatpush.bf16.msra.mxu0 0
    %297 = vmatpush.bf16.msra.mxu0 0
    %298 = vmatpush.bf16.msra.mxu0 0
    %299 = vmatpush.bf16.msra.mxu0 0
    %300 = vmatpush.bf16.msra.mxu0 0
    %301 = vmatpush.bf16.msra.mxu0 0
    %302 = vmatpush.bf16.msra.mxu0 %v293
    %303 = vmatmul.bf16.gmra.mxu0 %v280
    %v304 = vpop.f32.mrf.mxu0
    %v305 = vadd.f32 0.0, %v304
    %v306 = vpop.f32.mrf.mxu0
    %v307 = vadd.f32 0.0, %v306
    %308 = vmatmul.bf16.gmra.mxu0 %v283
    %v309 = vpop.f32.mrf.mxu0
    %v310 = vadd.f32 0.0, %v309
    %v311 = vpop.f32.mrf.mxu0
    %v312 = vadd.f32 0.0, %v311
    %313 = vmatmul.bf16.gmra.mxu0 %v286
    %v314 = vpop.f32.mrf.mxu0
    %v315 = vadd.f32 0.0, %v314
    %v316 = vpop.f32.mrf.mxu0
    %v317 = vadd.f32 0.0, %v316
    %318 = vmatmul.bf16.gmra.mxu0 %v289
    %v319 = vpop.f32.mrf.mxu0
    %v320 = vadd.f32 0.0, %v319
    %v321 = vpop.f32.mrf.mxu0
    %v322 = vadd.f32 0.0, %v321
    %323 = vdwg.mxu0
    %v325 = vsel %vm278, %v251, 0
    %v328 = vsel %vm278, %v252, 0
    %v331 = vsel %vm278, %v253, 0
    %v334 = vsel %vm278, %v254, 0
    %v337 = vsel %vm291, %v255, 0
    %339 = vmatpush.bf16.msra.mxu0 0
    %340 = vmatpush.bf16.msra.mxu0 0
    %341 = vmatpush.bf16.msra.mxu0 0
    %342 = vmatpush.bf16.msra.mxu0 0
    %343 = vmatpush.bf16.msra.mxu0 0
    %344 = vmatpush.bf16.msra.mxu0 0
    %345 = vmatpush.bf16.msra.mxu0 0
    %346 = vmatpush.bf16.msra.mxu0 %v337
    %347 = vmatmul.bf16.gmra.mxu0 %v325
    %v348 = vpop.f32.mrf.mxu0
    %v349 = vadd.f32 %v305, %v348
    %v350 = vpop.f32.mrf.mxu0
    %v351 = vadd.f32 %v307, %v350
    %352 = vmatmul.bf16.gmra.mxu0 %v328
    %v353 = vpop.f32.mrf.mxu0
    %v354 = vadd.f32 %v310, %v353
    %v355 = vpop.f32.mrf.mxu0
    %v356 = vadd.f32 %v312, %v355
    %357 = vmatmul.bf16.gmra.mxu0 %v331
    %v358 = vpop.f32.mrf.mxu0
    %v359 = vadd.f32 %v315, %v358
    %v360 = vpop.f32.mrf.mxu0
    %v361 = vadd.f32 %v317, %v360
    %362 = vmatmul.bf16.gmra.mxu0 %v334
    %v363 = vpop.f32.mrf.mxu0
    %v364 = vadd.f32 %v320, %v363
    %v365 = vpop.f32.mrf.mxu0
    %v366 = vadd.f32 %v322, %v365
    %367 = vdwg.mxu0
    %v368 = vpack.c.bf16 %v244, %v243
    %v369 = vpack.c.bf16 %v246, %v245
    %v370 = vpack.c.bf16 %v248, %v247
    %v371 = vpack.c.bf16 %v250, %v249
    %s372 = scalar_lea.vmem %s1, 4
    %v373 = vld [vmem:[%s372] sm:$0x3]
    %v375 = vsel %vm278, %v368, 0
    %v378 = vsel %vm278, %v369, 0
    %v381 = vsel %vm278, %v370, 0
    %v384 = vsel %vm278, %v371, 0
    %v387 = vsel %vm291, %v373, 0
    %389 = vmatpush.bf16.msra.mxu0 0
    %390 = vmatpush.bf16.msra.mxu0 0
    %391 = vmatpush.bf16.msra.mxu0 0
    %392 = vmatpush.bf16.msra.mxu0 0
    %393 = vmatpush.bf16.msra.mxu0 0
    %394 = vmatpush.bf16.msra.mxu0 0
    %395 = vmatpush.bf16.msra.mxu0 0
    %396 = vmatpush.bf16.msra.mxu0 %v387
    %397 = vmatmul.bf16.gmra.mxu0 %v375
    %v398 = vpop.f32.mrf.mxu0
    %v399 = vadd.f32 0.0, %v398
    %v400 = vpop.f32.mrf.mxu0
    %v401 = vadd.f32 0.0, %v400
    %402 = vmatmul.bf16.gmra.mxu0 %v378
    %v403 = vpop.f32.mrf.mxu0
    %v404 = vadd.f32 0.0, %v403
    %v405 = vpop.f32.mrf.mxu0
    %v406 = vadd.f32 0.0, %v405
    %407 = vmatmul.bf16.gmra.mxu0 %v381
    %v408 = vpop.f32.mrf.mxu0
    %v409 = vadd.f32 0.0, %v408
    %v410 = vpop.f32.mrf.mxu0
    %v411 = vadd.f32 0.0, %v410
    %412 = vmatmul.bf16.gmra.mxu0 %v384
    %v413 = vpop.f32.mrf.mxu0
    %v414 = vadd.f32 0.0, %v413
    %v415 = vpop.f32.mrf.mxu0
    %v416 = vadd.f32 0.0, %v415
    %417 = vdwg.mxu0
    %v418 = vadd.f32 %v349, %v399
    %v419 = vadd.f32 %v351, %v401
    %v420 = vadd.f32 %v354, %v404
    %v421 = vadd.f32 %v356, %v406
    %v422 = vadd.f32 %v359, %v409
    %v423 = vadd.f32 %v361, %v411
    %v424 = vadd.f32 %v364, %v414
    %v425 = vadd.f32 %v366, %v416
    %v426 = vld [vmem:[#allocation2] sm:$0x1]
    %v428 = vperm.slane %v426, 0
    %v430 = vadd.f32 %v418, %v428
    %v431 = vadd.f32 %v419, %v428
    %v432 = vadd.f32 %v420, %v428
    %v433 = vadd.f32 %v421, %v428
    %v434 = vadd.f32 %v422, %v428
    %v435 = vadd.f32 %v423, %v428
    %v436 = vadd.f32 %v424, %v428
    %v437 = vadd.f32 %v425, %v428
    %v438 = vmax.f32 %v430, 0.0
    %v439 = vmax.f32 %v431, 0.0
    %v440 = vmax.f32 %v432, 0.0
    %v441 = vmax.f32 %v433, 0.0
    %v442 = vmax.f32 %v434, 0.0
    %v443 = vmax.f32 %v435, 0.0
    %v444 = vmax.f32 %v436, 0.0
    %v445 = vmax.f32 %v437, 0.0
    %v454 = vrot.slane %v438, 2
    %v455 = vrot.slane %v438, 4
    %v456 = vrot.slane %v438, 6
    %v457 = vrot.slane %v439, 2
    %v458 = vrot.slane %v439, 4
    %v459 = vrot.slane %v439, 6
    %v460 = vrot.slane %v440, 2
    %v461 = vrot.slane %v440, 4
    %v462 = vrot.slane %v440, 6
    %v463 = vrot.slane %v441, 2
    %v464 = vrot.slane %v441, 4
    %v465 = vrot.slane %v441, 6
    %v466 = vrot.slane %v442, 2
    %v467 = vrot.slane %v442, 4
    %v468 = vrot.slane %v442, 6
    %v469 = vrot.slane %v443, 2
    %v470 = vrot.slane %v443, 4
    %v471 = vrot.slane %v443, 6
    %v472 = vrot.slane %v444, 2
    %v473 = vrot.slane %v444, 4
    %v474 = vrot.slane %v444, 6
    %v475 = vrot.slane %v445, 2
    %v476 = vrot.slane %v445, 4
    %v477 = vrot.slane %v445, 6
    %vm502 = vcmask 517120
    %v503 = vsel %vm502, %v438, -inf
    %v504 = vrot.slane %v503, 4
    %v505 = vmax.f32 %v503, %v504
    %v506 = vrot.slane %v505, 2
    %v507 = vmax.f32 %v505, %v506
    %v508 = vrot.slane %v507, 1
    %v509 = vmax.f32 %v507, %v508
    %v510 = vsel %vm502, %v454, -inf
    %v511 = vrot.slane %v510, 4
    %v512 = vmax.f32 %v510, %v511
    %v513 = vrot.slane %v512, 2
    %v514 = vmax.f32 %v512, %v513
    %v515 = vrot.slane %v514, 1
    %v516 = vmax.f32 %v514, %v515
    %v517 = vsel %vm502, %v455, -inf
    %v518 = vrot.slane %v517, 4
    %v519 = vmax.f32 %v517, %v518
    %v520 = vrot.slane %v519, 2
    %v521 = vmax.f32 %v519, %v520
    %v522 = vrot.slane %v521, 1
    %v523 = vmax.f32 %v521, %v522
    %v524 = vsel %vm502, %v456, -inf
    %v525 = vrot.slane %v524, 4
    %v526 = vmax.f32 %v524, %v525
    %v527 = vrot.slane %v526, 2
    %v528 = vmax.f32 %v526, %v527
    %v529 = vrot.slane %v528, 1
    %v530 = vmax.f32 %v528, %v529
    %v531 = vsel %vm502, %v439, -inf
    %v532 = vrot.slane %v531, 4
    %v533 = vmax.f32 %v531, %v532
    %v534 = vrot.slane %v533, 2
    %v535 = vmax.f32 %v533, %v534
    %v536 = vrot.slane %v535, 1
    %v537 = vmax.f32 %v535, %v536
    %v538 = vsel %vm502, %v457, -inf
    %v539 = vrot.slane %v538, 4
    %v540 = vmax.f32 %v538, %v539
    %v541 = vrot.slane %v540, 2
    %v542 = vmax.f32 %v540, %v541
    %v543 = vrot.slane %v542, 1
    %v544 = vmax.f32 %v542, %v543
    %v545 = vsel %vm502, %v458, -inf
    %v546 = vrot.slane %v545, 4
    %v547 = vmax.f32 %v545, %v546
    %v548 = vrot.slane %v547, 2
    %v549 = vmax.f32 %v547, %v548
    %v550 = vrot.slane %v549, 1
    %v551 = vmax.f32 %v549, %v550
    %v552 = vsel %vm502, %v459, -inf
    %v553 = vrot.slane %v552, 4
    %v554 = vmax.f32 %v552, %v553
    %v555 = vrot.slane %v554, 2
    %v556 = vmax.f32 %v554, %v555
    %v557 = vrot.slane %v556, 1
    %v558 = vmax.f32 %v556, %v557
    %v559 = vsel %vm502, %v440, -inf
    %v560 = vrot.slane %v559, 4
    %v561 = vmax.f32 %v559, %v560
    %v562 = vrot.slane %v561, 2
    %v563 = vmax.f32 %v561, %v562
    %v564 = vrot.slane %v563, 1
    %v565 = vmax.f32 %v563, %v564
    %v566 = vsel %vm502, %v460, -inf
    %v567 = vrot.slane %v566, 4
    %v568 = vmax.f32 %v566, %v567
    %v569 = vrot.slane %v568, 2
    %v570 = vmax.f32 %v568, %v569
    %v571 = vrot.slane %v570, 1
    %v572 = vmax.f32 %v570, %v571
    %v573 = vsel %vm502, %v461, -inf
    %v574 = vrot.slane %v573, 4
    %v575 = vmax.f32 %v573, %v574
    %v576 = vrot.slane %v575, 2
    %v577 = vmax.f32 %v575, %v576
    %v578 = vrot.slane %v577, 1
    %v579 = vmax.f32 %v577, %v578
    %v580 = vsel %vm502, %v462, -inf
    %v581 = vrot.slane %v580, 4
    %v582 = vmax.f32 %v580, %v581
    %v583 = vrot.slane %v582, 2
    %v584 = vmax.f32 %v582, %v583
    %v585 = vrot.slane %v584, 1
    %v586 = vmax.f32 %v584, %v585
    %v587 = vsel %vm502, %v441, -inf
    %v588 = vrot.slane %v587, 4
    %v589 = vmax.f32 %v587, %v588
    %v590 = vrot.slane %v589, 2
    %v591 = vmax.f32 %v589, %v590
    %v592 = vrot.slane %v591, 1
    %v593 = vmax.f32 %v591, %v592
    %v594 = vsel %vm502, %v463, -inf
    %v595 = vrot.slane %v594, 4
    %v596 = vmax.f32 %v594, %v595
    %v597 = vrot.slane %v596, 2
    %v598 = vmax.f32 %v596, %v597
    %v599 = vrot.slane %v598, 1
    %v600 = vmax.f32 %v598, %v599
    %v601 = vsel %vm502, %v464, -inf
    %v602 = vrot.slane %v601, 4
    %v603 = vmax.f32 %v601, %v602
    %v604 = vrot.slane %v603, 2
    %v605 = vmax.f32 %v603, %v604
    %v606 = vrot.slane %v605, 1
    %v607 = vmax.f32 %v605, %v606
    %v608 = vsel %vm502, %v465, -inf
    %v609 = vrot.slane %v608, 4
    %v610 = vmax.f32 %v608, %v609
    %v611 = vrot.slane %v610, 2
    %v612 = vmax.f32 %v610, %v611
    %v613 = vrot.slane %v612, 1
    %v614 = vmax.f32 %v612, %v613
    %v615 = vsel %vm502, %v442, -inf
    %v616 = vrot.slane %v615, 4
    %v617 = vmax.f32 %v615, %v616
    %v618 = vrot.slane %v617, 2
    %v619 = vmax.f32 %v617, %v618
    %v620 = vrot.slane %v619, 1
    %v621 = vmax.f32 %v619, %v620
    %v622 = vsel %vm502, %v466, -inf
    %v623 = vrot.slane %v622, 4
    %v624 = vmax.f32 %v622, %v623
    %v625 = vrot.slane %v624, 2
    %v626 = vmax.f32 %v624, %v625
    %v627 = vrot.slane %v626, 1
    %v628 = vmax.f32 %v626, %v627
    %v629 = vsel %vm502, %v467, -inf
    %v630 = vrot.slane %v629, 4
    %v631 = vmax.f32 %v629, %v630
    %v632 = vrot.slane %v631, 2
    %v633 = vmax.f32 %v631, %v632
    %v634 = vrot.slane %v633, 1
    %v635 = vmax.f32 %v633, %v634
    %v636 = vsel %vm502, %v468, -inf
    %v637 = vrot.slane %v636, 4
    %v638 = vmax.f32 %v636, %v637
    %v639 = vrot.slane %v638, 2
    %v640 = vmax.f32 %v638, %v639
    %v641 = vrot.slane %v640, 1
    %v642 = vmax.f32 %v640, %v641
    %v643 = vsel %vm502, %v443, -inf
    %v644 = vrot.slane %v643, 4
    %v645 = vmax.f32 %v643, %v644
    %v646 = vrot.slane %v645, 2
    %v647 = vmax.f32 %v645, %v646
    %v648 = vrot.slane %v647, 1
    %v649 = vmax.f32 %v647, %v648
    %v650 = vsel %vm502, %v469, -inf
    %v651 = vrot.slane %v650, 4
    %v652 = vmax.f32 %v650, %v651
    %v653 = vrot.slane %v652, 2
    %v654 = vmax.f32 %v652, %v653
    %v655 = vrot.slane %v654, 1
    %v656 = vmax.f32 %v654, %v655
    %v657 = vsel %vm502, %v470, -inf
    %v658 = vrot.slane %v657, 4
    %v659 = vmax.f32 %v657, %v658
    %v660 = vrot.slane %v659, 2
    %v661 = vmax.f32 %v659, %v660
    %v662 = vrot.slane %v661, 1
    %v663 = vmax.f32 %v661, %v662
    %v664 = vsel %vm502, %v471, -inf
    %v665 = vrot.slane %v664, 4
    %v666 = vmax.f32 %v664, %v665
    %v667 = vrot.slane %v666, 2
    %v668 = vmax.f32 %v666, %v667
    %v669 = vrot.slane %v668, 1
    %v670 = vmax.f32 %v668, %v669
    %v671 = vsel %vm502, %v444, -inf
    %v672 = vrot.slane %v671, 4
    %v673 = vmax.f32 %v671, %v672
    %v674 = vrot.slane %v673, 2
    %v675 = vmax.f32 %v673, %v674
    %v676 = vrot.slane %v675, 1
    %v677 = vmax.f32 %v675, %v676
    %v678 = vsel %vm502, %v472, -inf
    %v679 = vrot.slane %v678, 4
    %v680 = vmax.f32 %v678, %v679
    %v681 = vrot.slane %v680, 2
    %v682 = vmax.f32 %v680, %v681
    %v683 = vrot.slane %v682, 1
    %v684 = vmax.f32 %v682, %v683
    %v685 = vsel %vm502, %v473, -inf
    %v686 = vrot.slane %v685, 4
    %v687 = vmax.f32 %v685, %v686
    %v688 = vrot.slane %v687, 2
    %v689 = vmax.f32 %v687, %v688
    %v690 = vrot.slane %v689, 1
    %v691 = vmax.f32 %v689, %v690
    %v692 = vsel %vm502, %v474, -inf
    %v693 = vrot.slane %v692, 4
    %v694 = vmax.f32 %v692, %v693
    %v695 = vrot.slane %v694, 2
    %v696 = vmax.f32 %v694, %v695
    %v697 = vrot.slane %v696, 1
    %v698 = vmax.f32 %v696, %v697
    %v699 = vsel %vm502, %v445, -inf
    %v700 = vrot.slane %v699, 4
    %v701 = vmax.f32 %v699, %v700
    %v702 = vrot.slane %v701, 2
    %v703 = vmax.f32 %v701, %v702
    %v704 = vrot.slane %v703, 1
    %v705 = vmax.f32 %v703, %v704
    %v706 = vsel %vm502, %v475, -inf
    %v707 = vrot.slane %v706, 4
    %v708 = vmax.f32 %v706, %v707
    %v709 = vrot.slane %v708, 2
    %v710 = vmax.f32 %v708, %v709
    %v711 = vrot.slane %v710, 1
    %v712 = vmax.f32 %v710, %v711
    %v713 = vsel %vm502, %v476, -inf
    %v714 = vrot.slane %v713, 4
    %v715 = vmax.f32 %v713, %v714
    %v716 = vrot.slane %v715, 2
    %v717 = vmax.f32 %v715, %v716
    %v718 = vrot.slane %v717, 1
    %v719 = vmax.f32 %v717, %v718
    %v720 = vsel %vm502, %v477, -inf
    %v721 = vrot.slane %v720, 4
    %v722 = vmax.f32 %v720, %v721
    %v723 = vrot.slane %v722, 2
    %v724 = vmax.f32 %v722, %v723
    %v725 = vrot.slane %v724, 1
    %v726 = vmax.f32 %v724, %v725
    %v727 = vand.u32 %v137, 3
    %v728 = vand.u32 %v138, 3
    %v729 = vand.u32 %v139, 3
    %v730 = vand.u32 %v140, 3
    %vm731 = vcmp.ne.s32.totalorder %v727, 0
    %vm732 = vcmp.ne.s32.totalorder %v728, 0
    %vm733 = vcmp.ne.s32.totalorder %v729, 0
    %vm734 = vcmp.ne.s32.totalorder %v730, 0
    %vm767 = vcmask 1041409
    %v768 = vsel %vm767, %v516, %v509
    %vm769 = vcmask 1042434
    %v770 = vsel %vm769, %v523, %v768
    %vm771 = vcmask 1043459
    %v772 = vsel %vm771, %v530, %v770
    %vm773 = vcmask 1044484
    %v774 = vsel %vm773, %v537, %v772
    %vm775 = vcmask 1045509
    %v776 = vsel %vm775, %v544, %v774
    %vm777 = vcmask 1046534
    %v778 = vsel %vm777, %v551, %v776
    %vm779 = vcmask 1047559
    %v780 = vsel %vm779, %v558, %v778
    %v781 = vsel %vm767, %v572, %v565
    %v782 = vsel %vm769, %v579, %v781
    %v783 = vsel %vm771, %v586, %v782
    %v784 = vsel %vm773, %v593, %v783
    %v785 = vsel %vm775, %v600, %v784
    %v786 = vsel %vm777, %v607, %v785
    %v787 = vsel %vm779, %v614, %v786
    %v788 = vsel %vm767, %v628, %v621
    %v789 = vsel %vm769, %v635, %v788
    %v790 = vsel %vm771, %v642, %v789
    %v791 = vsel %vm773, %v649, %v790
    %v792 = vsel %vm775, %v656, %v791
    %v793 = vsel %vm777, %v663, %v792
    %v794 = vsel %vm779, %v670, %v793
    %v795 = vsel %vm767, %v684, %v677
    %v796 = vsel %vm769, %v691, %v795
    %v797 = vsel %vm771, %v698, %v796
    %v798 = vsel %vm773, %v705, %v797
    %v799 = vsel %vm775, %v712, %v798
    %v800 = vsel %vm777, %v719, %v799
    %v801 = vsel %vm779, %v726, %v800
    %v806 = vrot.slane %v780, 7
    %v807 = vrot.slane %v787, 7
    %v808 = vrot.slane %v794, 7
    %v809 = vrot.slane %v801, 7
    %v810 = vsel %vm169, %v808, %v809
    %v811 = vsel %vm169, %v807, %v808
    %v812 = vsel %vm169, %v806, %v807
    %v813 = vsel %vm169, %v809, %v806
    %v814 = vsel %vm731, 1, 0
    %v815 = vsel %vm732, 1, 0
    %v816 = vsel %vm733, 1, 0
    %v817 = vsel %vm734, 1, 0
    %vm818 = vcmp.eq.s32.totalorder %v814, 1
    %vm819 = vcmp.eq.s32.totalorder %v815, 1
    %vm820 = vcmp.eq.s32.totalorder %v816, 1
    %vm821 = vcmp.eq.s32.totalorder %v817, 1
    %v822 = vsel %vm818, %v813, 0.0
    %v823 = vsel %vm819, %v812, 0.0
    %v824 = vsel %vm820, %v811, 0.0
    %v825 = vsel %vm821, %v810, 0.0
    %vm826 = vcmp.ne.s32.totalorder %v727, 3
    %vm827 = vcmp.ne.s32.totalorder %v728, 3
    %vm828 = vcmp.ne.s32.totalorder %v729, 3
    %vm829 = vcmp.ne.s32.totalorder %v730, 3
    %v830 = vrot.slane %v780, 1
    %v831 = vrot.slane %v787, 1
    %v832 = vrot.slane %v794, 1
    %v833 = vrot.slane %v801, 1
    %v834 = vsel %vm218, %v832, %v833
    %v835 = vsel %vm218, %v831, %v832
    %v836 = vsel %vm218, %v830, %v831
    %v837 = vsel %vm218, %v833, %v830
    %v838 = vsel %vm826, 1, 0
    %v839 = vsel %vm827, 1, 0
    %v840 = vsel %vm828, 1, 0
    %v841 = vsel %vm829, 1, 0
    %vm842 = vcmp.eq.s32.totalorder %v838, 1
    %vm843 = vcmp.eq.s32.totalorder %v839, 1
    %vm844 = vcmp.eq.s32.totalorder %v840, 1
    %vm845 = vcmp.eq.s32.totalorder %v841, 1
    %v846 = vsel %vm842, %v836, 0.0
    %v847 = vsel %vm843, %v835, 0.0
    %v848 = vsel %vm844, %v834, 0.0
    %v849 = vsel %vm845, %v837, 0.0
    %v850 = vpack.c.bf16 %v823, %v822
    %v851 = vpack.c.bf16 %v825, %v824
    %v852 = vld [vmem:[#allocation5] sm:$0xf]
    %v853 = vld [vmem:[#allocation5 + $0x4] sm:$0xf]
    %v854 = vld [vmem:[#allocation5 + $0x8] sm:$0xf]
    %v855 = vld [vmem:[#allocation5 + $0xc] sm:$0xf]
    %v856 = vld [vmem:[#allocation5 + $0x10] sm:$0xf]
    %v857 = vld [vmem:[#allocation5 + $0x14] sm:$0xf]
    %v858 = vld [vmem:[#allocation5 + $0x18] sm:$0xf]
    %v859 = vld [vmem:[#allocation5 + $0x1c] sm:$0xf]
    %v860 = vpack.c.bf16 %v509, %v509
    %v861 = vpack.c.bf16 %v516, %v516
    %v862 = vpack.c.bf16 %v523, %v523
    %v863 = vpack.c.bf16 %v530, %v530
    %v864 = vpack.c.bf16 %v537, %v537
    %v865 = vpack.c.bf16 %v544, %v544
    %v866 = vpack.c.bf16 %v551, %v551
    %v867 = vpack.c.bf16 %v558, %v558
    %v868 = vpack.c.bf16 %v565, %v565
    %v869 = vpack.c.bf16 %v572, %v572
    %v870 = vpack.c.bf16 %v579, %v579
    %v871 = vpack.c.bf16 %v586, %v586
    %v872 = vpack.c.bf16 %v593, %v593
    %v873 = vpack.c.bf16 %v600, %v600
    %v874 = vpack.c.bf16 %v607, %v607
    %v875 = vpack.c.bf16 %v614, %v614
    %v876 = vpack.c.bf16 %v621, %v621
    %v877 = vpack.c.bf16 %v628, %v628
    %v878 = vpack.c.bf16 %v635, %v635
    %v879 = vpack.c.bf16 %v642, %v642
    %v880 = vpack.c.bf16 %v649, %v649
    %v881 = vpack.c.bf16 %v656, %v656
    %v882 = vpack.c.bf16 %v663, %v663
    %v883 = vpack.c.bf16 %v670, %v670
    %v884 = vpack.c.bf16 %v677, %v677
    %v885 = vpack.c.bf16 %v684, %v684
    %v886 = vpack.c.bf16 %v691, %v691
    %v887 = vpack.c.bf16 %v698, %v698
    %v888 = vpack.c.bf16 %v705, %v705
    %v889 = vpack.c.bf16 %v712, %v712
    %v890 = vpack.c.bf16 %v719, %v719
    %v891 = vpack.c.bf16 %v726, %v726
    %s892 = scalar_lea.vmem [#allocation5], 32
    %v893 = vld [vmem:[%s892] sm:$0xf]
    %v894 = vld [vmem:[%s892 + $0x4] sm:$0xf]
    %v895 = vld [vmem:[%s892 + $0x8] sm:$0xf]
    %v896 = vld [vmem:[%s892 + $0xc] sm:$0xf]
    %v897 = vld [vmem:[%s892 + $0x10] sm:$0xf]
    %v898 = vld [vmem:[%s892 + $0x14] sm:$0xf]
    %v899 = vld [vmem:[%s892 + $0x18] sm:$0xf]
    %v900 = vld [vmem:[%s892 + $0x1c] sm:$0xf]
    %v933 = vunpack.c.l.b16 %v860
    %v934 = vunpack.c.l.b16 %v861
    %v935 = vunpack.c.l.b16 %v862
    %v936 = vunpack.c.l.b16 %v863
    %v937 = vunpack.c.l.b16 %v864
    %v938 = vunpack.c.l.b16 %v865
    %v939 = vunpack.c.l.b16 %v866
    %v940 = vunpack.c.l.b16 %v867
    %v941 = vunpack.c.l.b16 %v868
    %v942 = vunpack.c.l.b16 %v869
    %v943 = vunpack.c.l.b16 %v870
    %v944 = vunpack.c.l.b16 %v871
    %v945 = vunpack.c.l.b16 %v872
    %v946 = vunpack.c.l.b16 %v873
    %v947 = vunpack.c.l.b16 %v874
    %v948 = vunpack.c.l.b16 %v875
    %v949 = vunpack.c.l.b16 %v876
    %v950 = vunpack.c.l.b16 %v877
    %v951 = vunpack.c.l.b16 %v878
    %v952 = vunpack.c.l.b16 %v879
    %v953 = vunpack.c.l.b16 %v880
    %v954 = vunpack.c.l.b16 %v881
    %v955 = vunpack.c.l.b16 %v882
    %v956 = vunpack.c.l.b16 %v883
    %v957 = vunpack.c.l.b16 %v884
    %v958 = vunpack.c.l.b16 %v885
    %v959 = vunpack.c.l.b16 %v886
    %v960 = vunpack.c.l.b16 %v887
    %v961 = vunpack.c.l.b16 %v888
    %v962 = vunpack.c.l.b16 %v889
    %v963 = vunpack.c.l.b16 %v890
    %v964 = vunpack.c.l.b16 %v891
    %v965 = vsel %vm767, %v934, %v933
    %v966 = vsel %vm769, %v935, %v965
    %v967 = vsel %vm771, %v936, %v966
    %v968 = vsel %vm773, %v937, %v967
    %v969 = vsel %vm775, %v938, %v968
    %v970 = vsel %vm777, %v939, %v969
    %v971 = vsel %vm779, %v940, %v970
    %v972 = vsel %vm767, %v942, %v941
    %v973 = vsel %vm769, %v943, %v972
    %v974 = vsel %vm771, %v944, %v973
    %v975 = vsel %vm773, %v945, %v974
    %v976 = vsel %vm775, %v946, %v975
    %v977 = vsel %vm777, %v947, %v976
    %v978 = vsel %vm779, %v948, %v977
    %v979 = vsel %vm767, %v950, %v949
    %v980 = vsel %vm769, %v951, %v979
    %v981 = vsel %vm771, %v952, %v980
    %v982 = vsel %vm773, %v953, %v981
    %v983 = vsel %vm775, %v954, %v982
    %v984 = vsel %vm777, %v955, %v983
    %v985 = vsel %vm779, %v956, %v984
    %v986 = vsel %vm767, %v958, %v957
    %v987 = vsel %vm769, %v959, %v986
    %v988 = vsel %vm771, %v960, %v987
    %v989 = vsel %vm773, %v961, %v988
    %v990 = vsel %vm775, %v962, %v989
    %v991 = vsel %vm777, %v963, %v990
    %v992 = vsel %vm779, %v964, %v991
    %v993 = vpack.c.b16 %v978, %v971
    %v994 = vpack.c.b16 %v992, %v985
    %v1003 = vunpack.c.l.b16 %v893
    %v1004 = vunpack.c.l.b16 %v894
    %v1005 = vunpack.c.l.b16 %v895
    %v1006 = vunpack.c.l.b16 %v896
    %v1007 = vunpack.c.l.b16 %v897
    %v1008 = vunpack.c.l.b16 %v898
    %v1009 = vunpack.c.l.b16 %v899
    %v1010 = vunpack.c.l.b16 %v900
    %v1011 = vpack.c.b16 %v1004, %v1003
    %v1012 = vpack.c.b16 %v1006, %v1005
    %v1013 = vpack.c.b16 %v1008, %v1007
    %v1014 = vpack.c.b16 %v1010, %v1009
    %vm1019 = vcmask 523264
    %v1021 = vsel %vm1019, %v993, 0
    %v1024 = vsel %vm1019, %v994, 0
    %1026 = vmatpush.bf16.msra.mxu0 0
    %1027 = vmatpush.bf16.msra.mxu0 0
    %1028 = vmatpush.bf16.msra.mxu0 0
    %1029 = vmatpush.bf16.msra.mxu0 0
    %1030 = vmatpush.bf16.msra.mxu0 %v1014
    %1031 = vmatpush.bf16.msra.mxu0 %v1013
    %1032 = vmatpush.bf16.msra.mxu0 %v1012
    %1033 = vmatpush.bf16.msra.mxu0 %v1011
    %1034 = vmatmul.bf16.gmra.mxu0 %v1021
    %v1035 = vpop.f32.mrf.mxu0
    %v1036 = vadd.f32 0.0, %v1035
    %v1037 = vpop.f32.mrf.mxu0
    %v1038 = vadd.f32 0.0, %v1037
    %1039 = vmatmul.bf16.gmra.mxu0 %v1024
    %v1040 = vpop.f32.mrf.mxu0
    %v1041 = vadd.f32 0.0, %v1040
    %v1042 = vpop.f32.mrf.mxu0
    %v1043 = vadd.f32 0.0, %v1042
    %1044 = vdwg.mxu0
    %v1053 = vunpack.c.l.b16 %v852
    %v1054 = vunpack.c.l.b16 %v853
    %v1055 = vunpack.c.l.b16 %v854
    %v1056 = vunpack.c.l.b16 %v855
    %v1057 = vunpack.c.l.b16 %v856
    %v1058 = vunpack.c.l.b16 %v857
    %v1059 = vunpack.c.l.b16 %v858
    %v1060 = vunpack.c.l.b16 %v859
    %v1061 = vpack.c.b16 %v1054, %v1053
    %v1062 = vpack.c.b16 %v1056, %v1055
    %v1063 = vpack.c.b16 %v1058, %v1057
    %v1064 = vpack.c.b16 %v1060, %v1059
    %v1070 = vsel %vm1019, %v850, 0
    %v1073 = vsel %vm1019, %v851, 0
    %1075 = vmatpush.bf16.msra.mxu0 0
    %1076 = vmatpush.bf16.msra.mxu0 0
    %1077 = vmatpush.bf16.msra.mxu0 0
    %1078 = vmatpush.bf16.msra.mxu0 0
    %1079 = vmatpush.bf16.msra.mxu0 %v1064
    %1080 = vmatpush.bf16.msra.mxu0 %v1063
    %1081 = vmatpush.bf16.msra.mxu0 %v1062
    %1082 = vmatpush.bf16.msra.mxu0 %v1061
    %1083 = vmatmul.bf16.gmra.mxu0 %v1070
    %v1084 = vpop.f32.mrf.mxu0
    %v1085 = vadd.f32 %v1036, %v1084
    %v1086 = vpop.f32.mrf.mxu0
    %v1087 = vadd.f32 %v1038, %v1086
    %1088 = vmatmul.bf16.gmra.mxu0 %v1073
    %v1089 = vpop.f32.mrf.mxu0
    %v1090 = vadd.f32 %v1041, %v1089
    %v1091 = vpop.f32.mrf.mxu0
    %v1092 = vadd.f32 %v1043, %v1091
    %1093 = vdwg.mxu0
    %v1094 = vpack.c.bf16 %v847, %v846
    %v1095 = vpack.c.bf16 %v849, %v848
    %s1096 = scalar_lea.vmem [#allocation5], 64
    %v1097 = vld [vmem:[%s1096] sm:$0xf]
    %v1098 = vld [vmem:[%s1096 + $0x4] sm:$0xf]
    %v1099 = vld [vmem:[%s1096 + $0x8] sm:$0xf]
    %v1100 = vld [vmem:[%s1096 + $0xc] sm:$0xf]
    %v1101 = vld [vmem:[%s1096 + $0x10] sm:$0xf]
    %v1102 = vld [vmem:[%s1096 + $0x14] sm:$0xf]
    %v1103 = vld [vmem:[%s1096 + $0x18] sm:$0xf]
    %v1104 = vld [vmem:[%s1096 + $0x1c] sm:$0xf]
    %v1113 = vunpack.c.l.b16 %v1097
    %v1114 = vunpack.c.l.b16 %v1098
    %v1115 = vunpack.c.l.b16 %v1099
    %v1116 = vunpack.c.l.b16 %v1100
    %v1117 = vunpack.c.l.b16 %v1101
    %v1118 = vunpack.c.l.b16 %v1102
    %v1119 = vunpack.c.l.b16 %v1103
    %v1120 = vunpack.c.l.b16 %v1104
    %v1121 = vpack.c.b16 %v1114, %v1113
    %v1122 = vpack.c.b16 %v1116, %v1115
    %v1123 = vpack.c.b16 %v1118, %v1117
    %v1124 = vpack.c.b16 %v1120, %v1119
    %v1130 = vsel %vm1019, %v1094, 0
    %v1133 = vsel %vm1019, %v1095, 0
    %1135 = vmatpush.bf16.msra.mxu0 0
    %1136 = vmatpush.bf16.msra.mxu0 0
    %1137 = vmatpush.bf16.msra.mxu0 0
    %1138 = vmatpush.bf16.msra.mxu0 0
    %1139 = vmatpush.bf16.msra.mxu0 %v1124
    %1140 = vmatpush.bf16.msra.mxu0 %v1123
    %1141 = vmatpush.bf16.msra.mxu0 %v1122
    %1142 = vmatpush.bf16.msra.mxu0 %v1121
    %1143 = vmatmul.bf16.gmra.mxu0 %v1130
    %v1144 = vpop.f32.mrf.mxu0
    %v1145 = vadd.f32 0.0, %v1144
    %v1146 = vpop.f32.mrf.mxu0
    %v1147 = vadd.f32 0.0, %v1146
    %1148 = vmatmul.bf16.gmra.mxu0 %v1133
    %v1149 = vpop.f32.mrf.mxu0
    %v1150 = vadd.f32 0.0, %v1149
    %v1151 = vpop.f32.mrf.mxu0
    %v1152 = vadd.f32 0.0, %v1151
    %1153 = vdwg.mxu0
    %v1154 = vadd.f32 %v1085, %v1145
    %v1155 = vadd.f32 %v1087, %v1147
    %v1156 = vadd.f32 %v1090, %v1150
    %v1157 = vadd.f32 %v1092, %v1152
    %v1158 = vld [vmem:[#allocation7] sm:$0x1]
    %v1160 = vperm.slane %v1158, 0
    %v1162 = vadd.f32 %v1154, %v1160
    %v1163 = vadd.f32 %v1155, %v1160
    %v1164 = vadd.f32 %v1156, %v1160
    %v1165 = vadd.f32 %v1157, %v1160
    %v1166 = vmax.f32 %v1162, 0.0
    %v1167 = vmax.f32 %v1163, 0.0
    %v1168 = vmax.f32 %v1164, 0.0
    %v1169 = vmax.f32 %v1165, 0.0
    %v1174 = vrot.slane %v1166, 2
    %v1175 = vrot.slane %v1166, 4
    %v1176 = vrot.slane %v1166, 6
    %v1177 = vrot.slane %v1167, 2
    %v1178 = vrot.slane %v1167, 4
    %v1179 = vrot.slane %v1167, 6
    %v1180 = vrot.slane %v1168, 2
    %v1181 = vrot.slane %v1168, 4
    %v1182 = vrot.slane %v1168, 6
    %v1183 = vrot.slane %v1169, 2
    %v1184 = vrot.slane %v1169, 4
    %v1185 = vrot.slane %v1169, 6
    %v1198 = vsel %vm291, %v1166, -inf
    %v1199 = vrot.slane %v1198, 4
    %v1200 = vmax.f32 %v1198, %v1199
    %v1201 = vrot.slane %v1200, 2
    %v1202 = vmax.f32 %v1200, %v1201
    %v1203 = vrot.slane %v1202, 1
    %v1204 = vmax.f32 %v1202, %v1203
    %v1205 = vsel %vm291, %v1174, -inf
    %v1206 = vrot.slane %v1205, 4
    %v1207 = vmax.f32 %v1205, %v1206
    %v1208 = vrot.slane %v1207, 2
    %v1209 = vmax.f32 %v1207, %v1208
    %v1210 = vrot.slane %v1209, 1
    %v1211 = vmax.f32 %v1209, %v1210
    %v1212 = vsel %vm291, %v1175, -inf
    %v1213 = vrot.slane %v1212, 4
    %v1214 = vmax.f32 %v1212, %v1213
    %v1215 = vrot.slane %v1214, 2
    %v1216 = vmax.f32 %v1214, %v1215
    %v1217 = vrot.slane %v1216, 1
    %v1218 = vmax.f32 %v1216, %v1217
    %v1219 = vsel %vm291, %v1176, -inf
    %v1220 = vrot.slane %v1219, 4
    %v1221 = vmax.f32 %v1219, %v1220
    %v1222 = vrot.slane %v1221, 2
    %v1223 = vmax.f32 %v1221, %v1222
    %v1224 = vrot.slane %v1223, 1
    %v1225 = vmax.f32 %v1223, %v1224
    %v1226 = vsel %vm291, %v1167, -inf
    %v1227 = vrot.slane %v1226, 4
    %v1228 = vmax.f32 %v1226, %v1227
    %v1229 = vrot.slane %v1228, 2
    %v1230 = vmax.f32 %v1228, %v1229
    %v1231 = vrot.slane %v1230, 1
    %v1232 = vmax.f32 %v1230, %v1231
    %v1233 = vsel %vm291, %v1177, -inf
    %v1234 = vrot.slane %v1233, 4
    %v1235 = vmax.f32 %v1233, %v1234
    %v1236 = vrot.slane %v1235, 2
    %v1237 = vmax.f32 %v1235, %v1236
    %v1238 = vrot.slane %v1237, 1
    %v1239 = vmax.f32 %v1237, %v1238
    %v1240 = vsel %vm291, %v1178, -inf
    %v1241 = vrot.slane %v1240, 4
    %v1242 = vmax.f32 %v1240, %v1241
    %v1243 = vrot.slane %v1242, 2
    %v1244 = vmax.f32 %v1242, %v1243
    %v1245 = vrot.slane %v1244, 1
    %v1246 = vmax.f32 %v1244, %v1245
    %v1247 = vsel %vm291, %v1179, -inf
    %v1248 = vrot.slane %v1247, 4
    %v1249 = vmax.f32 %v1247, %v1248
    %v1250 = vrot.slane %v1249, 2
    %v1251 = vmax.f32 %v1249, %v1250
    %v1252 = vrot.slane %v1251, 1
    %v1253 = vmax.f32 %v1251, %v1252
    %v1254 = vsel %vm291, %v1168, -inf
    %v1255 = vrot.slane %v1254, 4
    %v1256 = vmax.f32 %v1254, %v1255
    %v1257 = vrot.slane %v1256, 2
    %v1258 = vmax.f32 %v1256, %v1257
    %v1259 = vrot.slane %v1258, 1
    %v1260 = vmax.f32 %v1258, %v1259
    %v1261 = vsel %vm291, %v1180, -inf
    %v1262 = vrot.slane %v1261, 4
    %v1263 = vmax.f32 %v1261, %v1262
    %v1264 = vrot.slane %v1263, 2
    %v1265 = vmax.f32 %v1263, %v1264
    %v1266 = vrot.slane %v1265, 1
    %v1267 = vmax.f32 %v1265, %v1266
    %v1268 = vsel %vm291, %v1181, -inf
    %v1269 = vrot.slane %v1268, 4
    %v1270 = vmax.f32 %v1268, %v1269
    %v1271 = vrot.slane %v1270, 2
    %v1272 = vmax.f32 %v1270, %v1271
    %v1273 = vrot.slane %v1272, 1
    %v1274 = vmax.f32 %v1272, %v1273
    %v1275 = vsel %vm291, %v1182, -inf
    %v1276 = vrot.slane %v1275, 4
    %v1277 = vmax.f32 %v1275, %v1276
    %v1278 = vrot.slane %v1277, 2
    %v1279 = vmax.f32 %v1277, %v1278
    %v1280 = vrot.slane %v1279, 1
    %v1281 = vmax.f32 %v1279, %v1280
    %v1282 = vsel %vm291, %v1169, -inf
    %v1283 = vrot.slane %v1282, 4
    %v1284 = vmax.f32 %v1282, %v1283
    %v1285 = vrot.slane %v1284, 2
    %v1286 = vmax.f32 %v1284, %v1285
    %v1287 = vrot.slane %v1286, 1
    %v1288 = vmax.f32 %v1286, %v1287
    %v1289 = vsel %vm291, %v1183, -inf
    %v1290 = vrot.slane %v1289, 4
    %v1291 = vmax.f32 %v1289, %v1290
    %v1292 = vrot.slane %v1291, 2
    %v1293 = vmax.f32 %v1291, %v1292
    %v1294 = vrot.slane %v1293, 1
    %v1295 = vmax.f32 %v1293, %v1294
    %v1296 = vsel %vm291, %v1184, -inf
    %v1297 = vrot.slane %v1296, 4
    %v1298 = vmax.f32 %v1296, %v1297
    %v1299 = vrot.slane %v1298, 2
    %v1300 = vmax.f32 %v1298, %v1299
    %v1301 = vrot.slane %v1300, 1
    %v1302 = vmax.f32 %v1300, %v1301
    %v1303 = vsel %vm291, %v1185, -inf
    %v1304 = vrot.slane %v1303, 4
    %v1305 = vmax.f32 %v1303, %v1304
    %v1306 = vrot.slane %v1305, 2
    %v1307 = vmax.f32 %v1305, %v1306
    %v1308 = vrot.slane %v1307, 1
    %v1309 = vmax.f32 %v1307, %v1308
    %v1310 = vand.u32 %v137, 1
    %v1311 = vand.u32 %v138, 1
    %vm1312 = vcmp.ne.s32.totalorder %v1310, 0
    %vm1313 = vcmp.ne.s32.totalorder %v1311, 0
    %v1330 = vsel %vm767, %v1211, %v1204
    %v1331 = vsel %vm769, %v1218, %v1330
    %v1332 = vsel %vm771, %v1225, %v1331
    %v1333 = vsel %vm773, %v1232, %v1332
    %v1334 = vsel %vm775, %v1239, %v1333
    %v1335 = vsel %vm777, %v1246, %v1334
    %v1336 = vsel %vm779, %v1253, %v1335
    %v1337 = vsel %vm767, %v1267, %v1260
    %v1338 = vsel %vm769, %v1274, %v1337
    %v1339 = vsel %vm771, %v1281, %v1338
    %v1340 = vsel %vm773, %v1288, %v1339
    %v1341 = vsel %vm775, %v1295, %v1340
    %v1342 = vsel %vm777, %v1302, %v1341
    %v1343 = vsel %vm779, %v1309, %v1342
    %v1346 = vrot.slane %v1336, 7
    %v1347 = vrot.slane %v1343, 7
    %v1348 = vsel %vm169, %v1346, %v1347
    %v1349 = vsel %vm169, %v1347, %v1346
    %v1350 = vsel %vm1312, 1, 0
    %v1351 = vsel %vm1313, 1, 0
    %vm1352 = vcmp.eq.s32.totalorder %v1350, 1
    %vm1353 = vcmp.eq.s32.totalorder %v1351, 1
    %v1354 = vsel %vm1352, %v1349, 0.0
    %v1355 = vsel %vm1353, %v1348, 0.0
    %vm1356 = vcmp.ne.s32.totalorder %v1310, 1
    %vm1357 = vcmp.ne.s32.totalorder %v1311, 1
    %v1358 = vrot.slane %v1336, 1
    %v1359 = vrot.slane %v1343, 1
    %v1360 = vsel %vm218, %v1358, %v1359
    %v1361 = vsel %vm218, %v1359, %v1358
    %v1362 = vsel %vm1356, 1, 0
    %v1363 = vsel %vm1357, 1, 0
    %vm1364 = vcmp.eq.s32.totalorder %v1362, 1
    %vm1365 = vcmp.eq.s32.totalorder %v1363, 1
    %v1366 = vsel %vm1364, %v1360, 0.0
    %v1367 = vsel %vm1365, %v1361, 0.0
    %v1368 = vpack.c.bf16 %v1355, %v1354
    %v1369 = vld [vmem:[#allocation8] sm:$0xff]
    %v1370 = vld [vmem:[#allocation8 + $0x8] sm:$0xff]
    %v1371 = vld [vmem:[#allocation8 + $0x10] sm:$0xff]
    %v1372 = vld [vmem:[#allocation8 + $0x18] sm:$0xff]
    %v1373 = vld [vmem:[#allocation8 + $0x20] sm:$0xff]
    %v1374 = vld [vmem:[#allocation8 + $0x28] sm:$0xff]
    %v1375 = vld [vmem:[#allocation8 + $0x30] sm:$0xff]
    %v1376 = vld [vmem:[#allocation8 + $0x38] sm:$0xff]
    %v1377 = vld [vmem:[#allocation8 + $0x40] sm:$0xff]
    %v1378 = vld [vmem:[#allocation8 + $0x48] sm:$0xff]
    %v1379 = vld [vmem:[#allocation8 + $0x50] sm:$0xff]
    %v1380 = vld [vmem:[#allocation8 + $0x58] sm:$0xff]
    %v1381 = vld [vmem:[#allocation8 + $0x60] sm:$0xff]
    %v1382 = vld [vmem:[#allocation8 + $0x68] sm:$0xff]
    %v1383 = vld [vmem:[#allocation8 + $0x70] sm:$0xff]
    %v1384 = vld [vmem:[#allocation8 + $0x78] sm:$0xff]
    %v1385 = vpack.c.bf16 %v1204, %v1204
    %v1386 = vpack.c.bf16 %v1211, %v1211
    %v1387 = vpack.c.bf16 %v1218, %v1218
    %v1388 = vpack.c.bf16 %v1225, %v1225
    %v1389 = vpack.c.bf16 %v1232, %v1232
    %v1390 = vpack.c.bf16 %v1239, %v1239
    %v1391 = vpack.c.bf16 %v1246, %v1246
    %v1392 = vpack.c.bf16 %v1253, %v1253
    %v1393 = vpack.c.bf16 %v1260, %v1260
    %v1394 = vpack.c.bf16 %v1267, %v1267
    %v1395 = vpack.c.bf16 %v1274, %v1274
    %v1396 = vpack.c.bf16 %v1281, %v1281
    %v1397 = vpack.c.bf16 %v1288, %v1288
    %v1398 = vpack.c.bf16 %v1295, %v1295
    %v1399 = vpack.c.bf16 %v1302, %v1302
    %v1400 = vpack.c.bf16 %v1309, %v1309
    %s1401 = scalar_lea.vmem [#allocation8], 128
    %v1402 = vld [vmem:[%s1401] sm:$0xff]
    %v1403 = vld [vmem:[%s1401 + $0x8] sm:$0xff]
    %v1404 = vld [vmem:[%s1401 + $0x10] sm:$0xff]
    %v1405 = vld [vmem:[%s1401 + $0x18] sm:$0xff]
    %v1406 = vld [vmem:[%s1401 + $0x20] sm:$0xff]
    %v1407 = vld [vmem:[%s1401 + $0x28] sm:$0xff]
    %v1408 = vld [vmem:[%s1401 + $0x30] sm:$0xff]
    %v1409 = vld [vmem:[%s1401 + $0x38] sm:$0xff]
    %v1410 = vld [vmem:[%s1401 + $0x40] sm:$0xff]
    %v1411 = vld [vmem:[%s1401 + $0x48] sm:$0xff]
    %v1412 = vld [vmem:[%s1401 + $0x50] sm:$0xff]
    %v1413 = vld [vmem:[%s1401 + $0x58] sm:$0xff]
    %v1414 = vld [vmem:[%s1401 + $0x60] sm:$0xff]
    %v1415 = vld [vmem:[%s1401 + $0x68] sm:$0xff]
    %v1416 = vld [vmem:[%s1401 + $0x70] sm:$0xff]
    %v1417 = vld [vmem:[%s1401 + $0x78] sm:$0xff]
    %v1434 = vunpack.c.l.b16 %v1385
    %v1435 = vunpack.c.l.b16 %v1386
    %v1436 = vunpack.c.l.b16 %v1387
    %v1437 = vunpack.c.l.b16 %v1388
    %v1438 = vunpack.c.l.b16 %v1389
    %v1439 = vunpack.c.l.b16 %v1390
    %v1440 = vunpack.c.l.b16 %v1391
    %v1441 = vunpack.c.l.b16 %v1392
    %v1442 = vunpack.c.l.b16 %v1393
    %v1443 = vunpack.c.l.b16 %v1394
    %v1444 = vunpack.c.l.b16 %v1395
    %v1445 = vunpack.c.l.b16 %v1396
    %v1446 = vunpack.c.l.b16 %v1397
    %v1447 = vunpack.c.l.b16 %v1398
    %v1448 = vunpack.c.l.b16 %v1399
    %v1449 = vunpack.c.l.b16 %v1400
    %v1450 = vsel %vm767, %v1435, %v1434
    %v1451 = vsel %vm769, %v1436, %v1450
    %v1452 = vsel %vm771, %v1437, %v1451
    %v1453 = vsel %vm773, %v1438, %v1452
    %v1454 = vsel %vm775, %v1439, %v1453
    %v1455 = vsel %vm777, %v1440, %v1454
    %v1456 = vsel %vm779, %v1441, %v1455
    %v1457 = vsel %vm767, %v1443, %v1442
    %v1458 = vsel %vm769, %v1444, %v1457
    %v1459 = vsel %vm771, %v1445, %v1458
    %v1460 = vsel %vm773, %v1446, %v1459
    %v1461 = vsel %vm775, %v1447, %v1460
    %v1462 = vsel %vm777, %v1448, %v1461
    %v1463 = vsel %vm779, %v1449, %v1462
    %v1464 = vpack.c.b16 %v1463, %v1456
    %v1482 = vunpack.c.l.b16 %v1402
    %v1483 = vunpack.c.h.b16 %v1402
    %v1484 = vunpack.c.l.b16 %v1403
    %v1485 = vunpack.c.h.b16 %v1403
    %v1486 = vunpack.c.l.b16 %v1404
    %v1487 = vunpack.c.h.b16 %v1404
    %v1488 = vunpack.c.l.b16 %v1405
    %v1489 = vunpack.c.h.b16 %v1405
    %v1490 = vunpack.c.l.b16 %v1406
    %v1491 = vunpack.c.h.b16 %v1406
    %v1492 = vunpack.c.l.b16 %v1407
    %v1493 = vunpack.c.h.b16 %v1407
    %v1494 = vunpack.c.l.b16 %v1408
    %v1495 = vunpack.c.h.b16 %v1408
    %v1496 = vunpack.c.l.b16 %v1409
    %v1497 = vunpack.c.h.b16 %v1409
    %v1498 = vunpack.c.l.b16 %v1410
    %v1499 = vunpack.c.h.b16 %v1410
    %v1500 = vunpack.c.l.b16 %v1411
    %v1501 = vunpack.c.h.b16 %v1411
    %v1502 = vunpack.c.l.b16 %v1412
    %v1503 = vunpack.c.h.b16 %v1412
    %v1504 = vunpack.c.l.b16 %v1413
    %v1505 = vunpack.c.h.b16 %v1413
    %v1506 = vunpack.c.l.b16 %v1414
    %v1507 = vunpack.c.h.b16 %v1414
    %v1508 = vunpack.c.l.b16 %v1415
    %v1509 = vunpack.c.h.b16 %v1415
    %v1510 = vunpack.c.l.b16 %v1416
    %v1511 = vunpack.c.h.b16 %v1416
    %v1512 = vunpack.c.l.b16 %v1417
    %v1513 = vunpack.c.h.b16 %v1417
    %v1514 = vpack.c.b16 %v1484, %v1482
    %v1515 = vpack.c.b16 %v1485, %v1483
    %v1516 = vpack.c.b16 %v1488, %v1486
    %v1517 = vpack.c.b16 %v1489, %v1487
    %v1518 = vpack.c.b16 %v1492, %v1490
    %v1519 = vpack.c.b16 %v1493, %v1491
    %v1520 = vpack.c.b16 %v1496, %v1494
    %v1521 = vpack.c.b16 %v1497, %v1495
    %v1522 = vpack.c.b16 %v1500, %v1498
    %v1523 = vpack.c.b16 %v1501, %v1499
    %v1524 = vpack.c.b16 %v1504, %v1502
    %v1525 = vpack.c.b16 %v1505, %v1503
    %v1526 = vpack.c.b16 %v1508, %v1506
    %v1527 = vpack.c.b16 %v1509, %v1507
    %v1528 = vpack.c.b16 %v1512, %v1510
    %v1529 = vpack.c.b16 %v1513, %v1511
    %1546 = vmatpush.bf16.msra.mxu0 %v1528
    %1547 = vmatpush.bf16.msra.mxu0 %v1526
    %1548 = vmatpush.bf16.msra.mxu0 %v1524
    %1549 = vmatpush.bf16.msra.mxu0 %v1522
    %1550 = vmatpush.bf16.msra.mxu0 %v1520
    %1551 = vmatpush.bf16.msra.mxu0 %v1518
    %1552 = vmatpush.bf16.msra.mxu0 %v1516
    %1553 = vmatpush.bf16.msra.mxu0 %v1514
    %1554 = vmatmul.bf16.gmra.mxu0 %v1464
    %v1555 = vpop.f32.mrf.mxu0
    %v1556 = vadd.f32 0.0, %v1555
    %v1557 = vpop.f32.mrf.mxu0
    %v1558 = vadd.f32 0.0, %v1557
    %1559 = vdwg.mxu0
    %1560 = vmatpush.bf16.msra.mxu0 %v1529
    %1561 = vmatpush.bf16.msra.mxu0 %v1527
    %1562 = vmatpush.bf16.msra.mxu0 %v1525
    %1563 = vmatpush.bf16.msra.mxu0 %v1523
    %1564 = vmatpush.bf16.msra.mxu0 %v1521
    %1565 = vmatpush.bf16.msra.mxu0 %v1519
    %1566 = vmatpush.bf16.msra.mxu0 %v1517
    %1567 = vmatpush.bf16.msra.mxu0 %v1515
    %1568 = vmatmul.bf16.gmra.mxu0 %v1464
    %v1569 = vpop.f32.mrf.mxu0
    %v1570 = vadd.f32 0.0, %v1569
    %v1571 = vpop.f32.mrf.mxu0
    %v1572 = vadd.f32 0.0, %v1571
    %1573 = vdwg.mxu0
    %v1590 = vunpack.c.l.b16 %v1369
    %v1591 = vunpack.c.h.b16 %v1369
    %v1592 = vunpack.c.l.b16 %v1370
    %v1593 = vunpack.c.h.b16 %v1370
    %v1594 = vunpack.c.l.b16 %v1371
    %v1595 = vunpack.c.h.b16 %v1371
    %v1596 = vunpack.c.l.b16 %v1372
    %v1597 = vunpack.c.h.b16 %v1372
    %v1598 = vunpack.c.l.b16 %v1373
    %v1599 = vunpack.c.h.b16 %v1373
    %v1600 = vunpack.c.l.b16 %v1374
    %v1601 = vunpack.c.h.b16 %v1374
    %v1602 = vunpack.c.l.b16 %v1375
    %v1603 = vunpack.c.h.b16 %v1375
    %v1604 = vunpack.c.l.b16 %v1376
    %v1605 = vunpack.c.h.b16 %v1376
    %v1606 = vunpack.c.l.b16 %v1377
    %v1607 = vunpack.c.h.b16 %v1377
    %v1608 = vunpack.c.l.b16 %v1378
    %v1609 = vunpack.c.h.b16 %v1378
    %v1610 = vunpack.c.l.b16 %v1379
    %v1611 = vunpack.c.h.b16 %v1379
    %v1612 = vunpack.c.l.b16 %v1380
    %v1613 = vunpack.c.h.b16 %v1380
    %v1614 = vunpack.c.l.b16 %v1381
    %v1615 = vunpack.c.h.b16 %v1381
    %v1616 = vunpack.c.l.b16 %v1382
    %v1617 = vunpack.c.h.b16 %v1382
    %v1618 = vunpack.c.l.b16 %v1383
    %v1619 = vunpack.c.h.b16 %v1383
    %v1620 = vunpack.c.l.b16 %v1384
    %v1621 = vunpack.c.h.b16 %v1384
    %v1622 = vpack.c.b16 %v1592, %v1590
    %v1623 = vpack.c.b16 %v1593, %v1591
    %v1624 = vpack.c.b16 %v1596, %v1594
    %v1625 = vpack.c.b16 %v1597, %v1595
    %v1626 = vpack.c.b16 %v1600, %v1598
    %v1627 = vpack.c.b16 %v1601, %v1599
    %v1628 = vpack.c.b16 %v1604, %v1602
    %v1629 = vpack.c.b16 %v1605, %v1603
    %v1630 = vpack.c.b16 %v1608, %v1606
    %v1631 = vpack.c.b16 %v1609, %v1607
    %v1632 = vpack.c.b16 %v1612, %v1610
    %v1633 = vpack.c.b16 %v1613, %v1611
    %v1634 = vpack.c.b16 %v1616, %v1614
    %v1635 = vpack.c.b16 %v1617, %v1615
    %v1636 = vpack.c.b16 %v1620, %v1618
    %v1637 = vpack.c.b16 %v1621, %v1619
    %1654 = vmatpush.bf16.msra.mxu0 %v1636
    %1655 = vmatpush.bf16.msra.mxu0 %v1634
    %1656 = vmatpush.bf16.msra.mxu0 %v1632
    %1657 = vmatpush.bf16.msra.mxu0 %v1630
    %1658 = vmatpush.bf16.msra.mxu0 %v1628
    %1659 = vmatpush.bf16.msra.mxu0 %v1626
    %1660 = vmatpush.bf16.msra.mxu0 %v1624
    %1661 = vmatpush.bf16.msra.mxu0 %v1622
    %1662 = vmatmul.bf16.gmra.mxu0 %v1368
    %v1663 = vpop.f32.mrf.mxu0
    %v1664 = vadd.f32 %v1556, %v1663
    %v1665 = vpop.f32.mrf.mxu0
    %v1666 = vadd.f32 %v1558, %v1665
    %1667 = vdwg.mxu0
    %1668 = vmatpush.bf16.msra.mxu0 %v1637
    %1669 = vmatpush.bf16.msra.mxu0 %v1635
    %1670 = vmatpush.bf16.msra.mxu0 %v1633
    %1671 = vmatpush.bf16.msra.mxu0 %v1631
    %1672 = vmatpush.bf16.msra.mxu0 %v1629
    %1673 = vmatpush.bf16.msra.mxu0 %v1627
    %1674 = vmatpush.bf16.msra.mxu0 %v1625
    %1675 = vmatpush.bf16.msra.mxu0 %v1623
    %1676 = vmatmul.bf16.gmra.mxu0 %v1368
    %v1677 = vpop.f32.mrf.mxu0
    %v1678 = vadd.f32 %v1570, %v1677
    %v1679 = vpop.f32.mrf.mxu0
    %v1680 = vadd.f32 %v1572, %v1679
    %1681 = vdwg.mxu0
    %v1682 = vpack.c.bf16 %v1367, %v1366
    %s1683 = scalar_lea.vmem [#allocation8], 256
    %v1684 = vld [vmem:[%s1683] sm:$0xff]
    %v1685 = vld [vmem:[%s1683 + $0x8] sm:$0xff]
    %v1686 = vld [vmem:[%s1683 + $0x10] sm:$0xff]
    %v1687 = vld [vmem:[%s1683 + $0x18] sm:$0xff]
    %v1688 = vld [vmem:[%s1683 + $0x20] sm:$0xff]
    %v1689 = vld [vmem:[%s1683 + $0x28] sm:$0xff]
    %v1690 = vld [vmem:[%s1683 + $0x30] sm:$0xff]
    %v1691 = vld [vmem:[%s1683 + $0x38] sm:$0xff]
    %v1692 = vld [vmem:[%s1683 + $0x40] sm:$0xff]
    %v1693 = vld [vmem:[%s1683 + $0x48] sm:$0xff]
    %v1694 = vld [vmem:[%s1683 + $0x50] sm:$0xff]
    %v1695 = vld [vmem:[%s1683 + $0x58] sm:$0xff]
    %v1696 = vld [vmem:[%s1683 + $0x60] sm:$0xff]
    %v1697 = vld [vmem:[%s1683 + $0x68] sm:$0xff]
    %v1698 = vld [vmem:[%s1683 + $0x70] sm:$0xff]
    %v1699 = vld [vmem:[%s1683 + $0x78] sm:$0xff]
    %v1716 = vunpack.c.l.b16 %v1684
    %v1717 = vunpack.c.h.b16 %v1684
    %v1718 = vunpack.c.l.b16 %v1685
    %v1719 = vunpack.c.h.b16 %v1685
    %v1720 = vunpack.c.l.b16 %v1686
    %v1721 = vunpack.c.h.b16 %v1686
    %v1722 = vunpack.c.l.b16 %v1687
    %v1723 = vunpack.c.h.b16 %v1687
    %v1724 = vunpack.c.l.b16 %v1688
    %v1725 = vunpack.c.h.b16 %v1688
    %v1726 = vunpack.c.l.b16 %v1689
    %v1727 = vunpack.c.h.b16 %v1689
    %v1728 = vunpack.c.l.b16 %v1690
    %v1729 = vunpack.c.h.b16 %v1690
    %v1730 = vunpack.c.l.b16 %v1691
    %v1731 = vunpack.c.h.b16 %v1691
    %v1732 = vunpack.c.l.b16 %v1692
    %v1733 = vunpack.c.h.b16 %v1692
    %v1734 = vunpack.c.l.b16 %v1693
    %v1735 = vunpack.c.h.b16 %v1693
    %v1736 = vunpack.c.l.b16 %v1694
    %v1737 = vunpack.c.h.b16 %v1694
    %v1738 = vunpack.c.l.b16 %v1695
    %v1739 = vunpack.c.h.b16 %v1695
    %v1740 = vunpack.c.l.b16 %v1696
    %v1741 = vunpack.c.h.b16 %v1696
    %v1742 = vunpack.c.l.b16 %v1697
    %v1743 = vunpack.c.h.b16 %v1697
    %v1744 = vunpack.c.l.b16 %v1698
    %v1745 = vunpack.c.h.b16 %v1698
    %v1746 = vunpack.c.l.b16 %v1699
    %v1747 = vunpack.c.h.b16 %v1699
    %v1748 = vpack.c.b16 %v1718, %v1716
    %v1749 = vpack.c.b16 %v1719, %v1717
    %v1750 = vpack.c.b16 %v1722, %v1720
    %v1751 = vpack.c.b16 %v1723, %v1721
    %v1752 = vpack.c.b16 %v1726, %v1724
    %v1753 = vpack.c.b16 %v1727, %v1725
    %v1754 = vpack.c.b16 %v1730, %v1728
    %v1755 = vpack.c.b16 %v1731, %v1729
    %v1756 = vpack.c.b16 %v1734, %v1732
    %v1757 = vpack.c.b16 %v1735, %v1733
    %v1758 = vpack.c.b16 %v1738, %v1736
    %v1759 = vpack.c.b16 %v1739, %v1737
    %v1760 = vpack.c.b16 %v1742, %v1740
    %v1761 = vpack.c.b16 %v1743, %v1741
    %v1762 = vpack.c.b16 %v1746, %v1744
    %v1763 = vpack.c.b16 %v1747, %v1745
    %1780 = vmatpush.bf16.msra.mxu0 %v1762
    %1781 = vmatpush.bf16.msra.mxu0 %v1760
    %1782 = vmatpush.bf16.msra.mxu0 %v1758
    %1783 = vmatpush.bf16.msra.mxu0 %v1756
    %1784 = vmatpush.bf16.msra.mxu0 %v1754
    %1785 = vmatpush.bf16.msra.mxu0 %v1752
    %1786 = vmatpush.bf16.msra.mxu0 %v1750
    %1787 = vmatpush.bf16.msra.mxu0 %v1748
    %1788 = vmatmul.bf16.gmra.mxu0 %v1682
    %v1789 = vpop.f32.mrf.mxu0
    %v1790 = vadd.f32 0.0, %v1789
    %v1791 = vpop.f32.mrf.mxu0
    %v1792 = vadd.f32 0.0, %v1791
    %1793 = vdwg.mxu0
    %1794 = vmatpush.bf16.msra.mxu0 %v1763
    %1795 = vmatpush.bf16.msra.mxu0 %v1761
    %1796 = vmatpush.bf16.msra.mxu0 %v1759
    %1797 = vmatpush.bf16.msra.mxu0 %v1757
    %1798 = vmatpush.bf16.msra.mxu0 %v1755
    %1799 = vmatpush.bf16.msra.mxu0 %v1753
    %1800 = vmatpush.bf16.msra.mxu0 %v1751
    %1801 = vmatpush.bf16.msra.mxu0 %v1749
    %1802 = vmatmul.bf16.gmra.mxu0 %v1682
    %v1803 = vpop.f32.mrf.mxu0
    %v1804 = vadd.f32 0.0, %v1803
    %v1805 = vpop.f32.mrf.mxu0
    %v1806 = vadd.f32 0.0, %v1805
    %1807 = vdwg.mxu0
    %v1808 = vadd.f32 %v1664, %v1790
    %v1809 = vadd.f32 %v1678, %v1804
    %v1810 = vadd.f32 %v1666, %v1792
    %v1811 = vadd.f32 %v1680, %v1806
    %v1812 = vld [vmem:[%s6] sm:$0x3]
    %v1814 = vperm.slane %v1812, 0
    %v1815 = vperm.slane %v1812, 1
    %v1818 = vadd.f32 %v1808, %v1814
    %v1819 = vadd.f32 %v1809, %v1815
    %v1820 = vadd.f32 %v1810, %v1814
    %v1821 = vadd.f32 %v1811, %v1815
    %v1822 = vmax.f32 %v1818, 0.0
    %v1823 = vmax.f32 %v1819, 0.0
    %v1824 = vmax.f32 %v1820, 0.0
    %v1825 = vmax.f32 %v1821, 0.0
    %v1830 = vrot.slane %v1823, 6
    %v1831 = vrot.slane %v1825, 6
    %v1832 = vsel %vm291, %v1822, %v1830
    %vm1833 = vcmask 1043458
    %v1834 = vsel %vm1833, %v1822, %v1830
    %v1835 = vrot.slane %v1834, 2
    %vm1836 = vcmask 1045508
    %v1837 = vsel %vm1836, %v1822, %v1830
    %v1838 = vrot.slane %v1837, 4
    %vm1839 = vcmask 1045504
    %v1840 = vsel %vm1839, %v1830, %v1822
    %v1841 = vrot.slane %v1840, 6
    %v1842 = vsel %vm291, %v1824, %v1831
    %v1843 = vsel %vm1833, %v1824, %v1831
    %v1844 = vrot.slane %v1843, 2
    %v1845 = vsel %vm1836, %v1824, %v1831
    %v1846 = vrot.slane %v1845, 4
    %v1847 = vsel %vm1839, %v1831, %v1824
    %v1848 = vrot.slane %v1847, 6
    %1849 = vst [vmem:[#allocation1] ss:$4 sm:$0xff] %v1832
    %v1850 = vld.sshfl [vmem:[#allocation1] sm:$0xff pattern:$0x73625140]
    %v1851 = vld.sshfl [vmem:[#allocation1 + $0x8] sm:$0xff pattern:$0x73625140]
    %s1852 = scalar_lea.vmem [#allocation1], 32
    %1853 = vst [vmem:[%s1852] ss:$4 sm:$0xff] %v1835
    %v1854 = vld.sshfl [vmem:[#allocation1 + $0x20] sm:$0xff pattern:$0x73625140]
    %v1855 = vld.sshfl [vmem:[#allocation1 + $0x28] sm:$0xff pattern:$0x73625140]
    %1856 = vst [vmem:[#allocation1] ss:$4 sm:$0xff] %v1838
    %v1857 = vld.sshfl [vmem:[#allocation1] sm:$0xff pattern:$0x73625140]
    %v1858 = vld.sshfl [vmem:[#allocation1 + $0x8] sm:$0xff pattern:$0x73625140]
    %1859 = vst [vmem:[%s1852] ss:$4 sm:$0xff] %v1841
    %v1860 = vld.sshfl [vmem:[#allocation1 + $0x20] sm:$0xff pattern:$0x73625140]
    %v1861 = vld.sshfl [vmem:[#allocation1 + $0x28] sm:$0xff pattern:$0x73625140]
    %1862 = vst [vmem:[#allocation1] ss:$4 sm:$0xff] %v1842
    %v1863 = vld.sshfl [vmem:[#allocation1] sm:$0xff pattern:$0x73625140]
    %v1864 = vld.sshfl [vmem:[#allocation1 + $0x8] sm:$0xff pattern:$0x73625140]
    %1865 = vst [vmem:[%s1852] ss:$4 sm:$0xff] %v1844
    %v1866 = vld.sshfl [vmem:[#allocation1 + $0x20] sm:$0xff pattern:$0x73625140]
    %v1867 = vld.sshfl [vmem:[#allocation1 + $0x28] sm:$0xff pattern:$0x73625140]
    %1868 = vst [vmem:[#allocation1] ss:$4 sm:$0xff] %v1846
    %v1869 = vld.sshfl [vmem:[#allocation1] sm:$0xff pattern:$0x73625140]
    %v1870 = vld.sshfl [vmem:[#allocation1 + $0x8] sm:$0xff pattern:$0x73625140]
    %1871 = vst [vmem:[%s1852] ss:$4 sm:$0xff] %v1848
    %v1872 = vld.sshfl [vmem:[#allocation1 + $0x20] sm:$0xff pattern:$0x73625140]
    %v1873 = vld.sshfl [vmem:[#allocation1 + $0x28] sm:$0xff pattern:$0x73625140]
    %v1890 = vsel %vm291, %v1850, -inf
    %v1891 = vrot.slane %v1890, 4
    %v1892 = vmax.f32 %v1890, %v1891
    %v1893 = vrot.slane %v1892, 2
    %v1894 = vmax.f32 %v1892, %v1893
    %v1895 = vrot.slane %v1894, 1
    %v1896 = vmax.f32 %v1894, %v1895
    %v1897 = vsel %vm291, %v1851, -inf
    %v1898 = vrot.slane %v1897, 4
    %v1899 = vmax.f32 %v1897, %v1898
    %v1900 = vrot.slane %v1899, 2
    %v1901 = vmax.f32 %v1899, %v1900
    %v1902 = vrot.slane %v1901, 1
    %v1903 = vmax.f32 %v1901, %v1902
    %v1904 = vsel %vm291, %v1854, -inf
    %v1905 = vrot.slane %v1904, 4
    %v1906 = vmax.f32 %v1904, %v1905
    %v1907 = vrot.slane %v1906, 2
    %v1908 = vmax.f32 %v1906, %v1907
    %v1909 = vrot.slane %v1908, 1
    %v1910 = vmax.f32 %v1908, %v1909
    %v1911 = vsel %vm291, %v1855, -inf
    %v1912 = vrot.slane %v1911, 4
    %v1913 = vmax.f32 %v1911, %v1912
    %v1914 = vrot.slane %v1913, 2
    %v1915 = vmax.f32 %v1913, %v1914
    %v1916 = vrot.slane %v1915, 1
    %v1917 = vmax.f32 %v1915, %v1916
    %v1918 = vsel %vm291, %v1857, -inf
    %v1919 = vrot.slane %v1918, 4
    %v1920 = vmax.f32 %v1918, %v1919
    %v1921 = vrot.slane %v1920, 2
    %v1922 = vmax.f32 %v1920, %v1921
    %v1923 = vrot.slane %v1922, 1
    %v1924 = vmax.f32 %v1922, %v1923
    %v1925 = vsel %vm291, %v1858, -inf
    %v1926 = vrot.slane %v1925, 4
    %v1927 = vmax.f32 %v1925, %v1926
    %v1928 = vrot.slane %v1927, 2
    %v1929 = vmax.f32 %v1927, %v1928
    %v1930 = vrot.slane %v1929, 1
    %v1931 = vmax.f32 %v1929, %v1930
    %v1932 = vsel %vm291, %v1860, -inf
    %v1933 = vrot.slane %v1932, 4
    %v1934 = vmax.f32 %v1932, %v1933
    %v1935 = vrot.slane %v1934, 2
    %v1936 = vmax.f32 %v1934, %v1935
    %v1937 = vrot.slane %v1936, 1
    %v1938 = vmax.f32 %v1936, %v1937
    %v1939 = vsel %vm291, %v1861, -inf
    %v1940 = vrot.slane %v1939, 4
    %v1941 = vmax.f32 %v1939, %v1940
    %v1942 = vrot.slane %v1941, 2
    %v1943 = vmax.f32 %v1941, %v1942
    %v1944 = vrot.slane %v1943, 1
    %v1945 = vmax.f32 %v1943, %v1944
    %v1946 = vsel %vm291, %v1863, -inf
    %v1947 = vrot.slane %v1946, 4
    %v1948 = vmax.f32 %v1946, %v1947
    %v1949 = vrot.slane %v1948, 2
    %v1950 = vmax.f32 %v1948, %v1949
    %v1951 = vrot.slane %v1950, 1
    %v1952 = vmax.f32 %v1950, %v1951
    %v1953 = vsel %vm291, %v1864, -inf
    %v1954 = vrot.slane %v1953, 4
    %v1955 = vmax.f32 %v1953, %v1954
    %v1956 = vrot.slane %v1955, 2
    %v1957 = vmax.f32 %v1955, %v1956
    %v1958 = vrot.slane %v1957, 1
    %v1959 = vmax.f32 %v1957, %v1958
    %v1960 = vsel %vm291, %v1866, -inf
    %v1961 = vrot.slane %v1960, 4
    %v1962 = vmax.f32 %v1960, %v1961
    %v1963 = vrot.slane %v1962, 2
    %v1964 = vmax.f32 %v1962, %v1963
    %v1965 = vrot.slane %v1964, 1
    %v1966 = vmax.f32 %v1964, %v1965
    %v1967 = vsel %vm291, %v1867, -inf
    %v1968 = vrot.slane %v1967, 4
    %v1969 = vmax.f32 %v1967, %v1968
    %v1970 = vrot.slane %v1969, 2
    %v1971 = vmax.f32 %v1969, %v1970
    %v1972 = vrot.slane %v1971, 1
    %v1973 = vmax.f32 %v1971, %v1972
    %v1974 = vsel %vm291, %v1869, -inf
    %v1975 = vrot.slane %v1974, 4
    %v1976 = vmax.f32 %v1974, %v1975
    %v1977 = vrot.slane %v1976, 2
    %v1978 = vmax.f32 %v1976, %v1977
    %v1979 = vrot.slane %v1978, 1
    %v1980 = vmax.f32 %v1978, %v1979
    %v1981 = vsel %vm291, %v1870, -inf
    %v1982 = vrot.slane %v1981, 4
    %v1983 = vmax.f32 %v1981, %v1982
    %v1984 = vrot.slane %v1983, 2
    %v1985 = vmax.f32 %v1983, %v1984
    %v1986 = vrot.slane %v1985, 1
    %v1987 = vmax.f32 %v1985, %v1986
    %v1988 = vsel %vm291, %v1872, -inf
    %v1989 = vrot.slane %v1988, 4
    %v1990 = vmax.f32 %v1988, %v1989
    %v1991 = vrot.slane %v1990, 2
    %v1992 = vmax.f32 %v1990, %v1991
    %v1993 = vrot.slane %v1992, 1
    %v1994 = vmax.f32 %v1992, %v1993
    %v1995 = vsel %vm291, %v1873, -inf
    %v1996 = vrot.slane %v1995, 4
    %v1997 = vmax.f32 %v1995, %v1996
    %v1998 = vrot.slane %v1997, 2
    %v1999 = vmax.f32 %v1997, %v1998
    %v2000 = vrot.slane %v1999, 1
    %v2001 = vmax.f32 %v1999, %v2000
    %v2002 = vpack.c.bf16 %v1896, %v1896
    %v2003 = vpack.c.bf16 %v1903, %v1903
    %v2004 = vpack.c.bf16 %v1910, %v1910
    %v2005 = vpack.c.bf16 %v1917, %v1917
    %v2006 = vpack.c.bf16 %v1924, %v1924
    %v2007 = vpack.c.bf16 %v1931, %v1931
    %v2008 = vpack.c.bf16 %v1938, %v1938
    %v2009 = vpack.c.bf16 %v1945, %v1945
    %v2010 = vpack.c.bf16 %v1952, %v1952
    %v2011 = vpack.c.bf16 %v1959, %v1959
    %v2012 = vpack.c.bf16 %v1966, %v1966
    %v2013 = vpack.c.bf16 %v1973, %v1973
    %v2014 = vpack.c.bf16 %v1980, %v1980
    %v2015 = vpack.c.bf16 %v1987, %v1987
    %v2016 = vpack.c.bf16 %v1994, %v1994
    %v2017 = vpack.c.bf16 %v2001, %v2001
    %v2018 = vld [vmem:[%s7] sm:$0xf]
    %v2019 = vld [vmem:[%s7 + $0x4] sm:$0xf]
    %v2020 = vld [vmem:[%s7 + $0x8] sm:$0xf]
    %v2021 = vld [vmem:[%s7 + $0xc] sm:$0xf]
    %v2022 = vld [vmem:[%s7 + $0x10] sm:$0xf]
    %v2023 = vld [vmem:[%s7 + $0x14] sm:$0xf]
    %v2024 = vld [vmem:[%s7 + $0x18] sm:$0xf]
    %v2025 = vld [vmem:[%s7 + $0x1c] sm:$0xf]
    %v2026 = vld [vmem:[%s7 + $0x20] sm:$0xf]
    %v2027 = vld [vmem:[%s7 + $0x24] sm:$0xf]
    %v2028 = vld [vmem:[%s7 + $0x28] sm:$0xf]
    %v2029 = vld [vmem:[%s7 + $0x2c] sm:$0xf]
    %v2030 = vld [vmem:[%s7 + $0x30] sm:$0xf]
    %v2031 = vld [vmem:[%s7 + $0x34] sm:$0xf]
    %v2032 = vld [vmem:[%s7 + $0x38] sm:$0xf]
    %v2033 = vld [vmem:[%s7 + $0x3c] sm:$0xf]
    %v2034 = vld [vmem:[%s7 + $0x40] sm:$0xf]
    %v2035 = vld [vmem:[%s7 + $0x44] sm:$0xf]
    %v2036 = vld [vmem:[%s7 + $0x48] sm:$0xf]
    %v2037 = vld [vmem:[%s7 + $0x4c] sm:$0xf]
    %v2038 = vld [vmem:[%s7 + $0x50] sm:$0xf]
    %v2039 = vld [vmem:[%s7 + $0x54] sm:$0xf]
    %v2040 = vld [vmem:[%s7 + $0x58] sm:$0xf]
    %v2041 = vld [vmem:[%s7 + $0x5c] sm:$0xf]
    %v2042 = vld [vmem:[%s7 + $0x60] sm:$0xf]
    %v2043 = vld [vmem:[%s7 + $0x64] sm:$0xf]
    %v2044 = vld [vmem:[%s7 + $0x68] sm:$0xf]
    %v2045 = vld [vmem:[%s7 + $0x6c] sm:$0xf]
    %v2046 = vld [vmem:[%s7 + $0x70] sm:$0xf]
    %v2047 = vld [vmem:[%s7 + $0x74] sm:$0xf]
    %v2048 = vld [vmem:[%s7 + $0x78] sm:$0xf]
    %v2049 = vld [vmem:[%s7 + $0x7c] sm:$0xf]
    %v2050 = vld [vmem:[%s8] sm:$0x1]
    %v2052 = vperm.slane %v2050, 0
    %v2070 = vunpack.c.l.b16 %v2002
    %v2071 = vunpack.c.l.b16 %v2003
    %v2072 = vunpack.c.l.b16 %v2004
    %v2073 = vunpack.c.l.b16 %v2005
    %v2074 = vunpack.c.l.b16 %v2006
    %v2075 = vunpack.c.l.b16 %v2007
    %v2076 = vunpack.c.l.b16 %v2008
    %v2077 = vunpack.c.l.b16 %v2009
    %v2078 = vunpack.c.l.b16 %v2010
    %v2079 = vunpack.c.l.b16 %v2011
    %v2080 = vunpack.c.l.b16 %v2012
    %v2081 = vunpack.c.l.b16 %v2013
    %v2082 = vunpack.c.l.b16 %v2014
    %v2083 = vunpack.c.l.b16 %v2015
    %v2084 = vunpack.c.l.b16 %v2016
    %v2085 = vunpack.c.l.b16 %v2017
    %v2086 = vsel %vm767, %v2072, %v2070
    %v2087 = vsel %vm769, %v2074, %v2086
    %v2088 = vsel %vm771, %v2076, %v2087
    %v2089 = vsel %vm773, %v2078, %v2088
    %v2090 = vsel %vm775, %v2080, %v2089
    %v2091 = vsel %vm777, %v2082, %v2090
    %v2092 = vsel %vm779, %v2084, %v2091
    %v2093 = vsel %vm767, %v2073, %v2071
    %v2094 = vsel %vm769, %v2075, %v2093
    %v2095 = vsel %vm771, %v2077, %v2094
    %v2096 = vsel %vm773, %v2079, %v2095
    %v2097 = vsel %vm775, %v2081, %v2096
    %v2098 = vsel %vm777, %v2083, %v2097
    %v2099 = vsel %vm779, %v2085, %v2098
    %v2100 = vpack.c.b16 %v2092, %v2092
    %v2101 = vpack.c.b16 %v2099, %v2099
    %v2136 = vunpack.c.l.b16 %v2018
    %v2137 = vunpack.c.l.b16 %v2019
    %v2138 = vunpack.c.l.b16 %v2020
    %v2139 = vunpack.c.l.b16 %v2021
    %v2140 = vunpack.c.l.b16 %v2022
    %v2141 = vunpack.c.l.b16 %v2023
    %v2142 = vunpack.c.l.b16 %v2024
    %v2143 = vunpack.c.l.b16 %v2025
    %v2144 = vunpack.c.l.b16 %v2026
    %v2145 = vunpack.c.l.b16 %v2027
    %v2146 = vunpack.c.l.b16 %v2028
    %v2147 = vunpack.c.l.b16 %v2029
    %v2148 = vunpack.c.l.b16 %v2030
    %v2149 = vunpack.c.l.b16 %v2031
    %v2150 = vunpack.c.l.b16 %v2032
    %v2151 = vunpack.c.l.b16 %v2033
    %v2152 = vunpack.c.l.b16 %v2034
    %v2153 = vunpack.c.l.b16 %v2035
    %v2154 = vunpack.c.l.b16 %v2036
    %v2155 = vunpack.c.l.b16 %v2037
    %v2156 = vunpack.c.l.b16 %v2038
    %v2157 = vunpack.c.l.b16 %v2039
    %v2158 = vunpack.c.l.b16 %v2040
    %v2159 = vunpack.c.l.b16 %v2041
    %v2160 = vunpack.c.l.b16 %v2042
    %v2161 = vunpack.c.l.b16 %v2043
    %v2162 = vunpack.c.l.b16 %v2044
    %v2163 = vunpack.c.l.b16 %v2045
    %v2164 = vunpack.c.l.b16 %v2046
    %v2165 = vunpack.c.l.b16 %v2047
    %v2166 = vunpack.c.l.b16 %v2048
    %v2167 = vunpack.c.l.b16 %v2049
    %v2168 = vpack.c.b16 %v2137, %v2136
    %v2169 = vpack.c.b16 %v2139, %v2138
    %v2170 = vpack.c.b16 %v2141, %v2140
    %v2171 = vpack.c.b16 %v2143, %v2142
    %v2172 = vpack.c.b16 %v2145, %v2144
    %v2173 = vpack.c.b16 %v2147, %v2146
    %v2174 = vpack.c.b16 %v2149, %v2148
    %v2175 = vpack.c.b16 %v2151, %v2150
    %v2176 = vpack.c.b16 %v2153, %v2152
    %v2177 = vpack.c.b16 %v2155, %v2154
    %v2178 = vpack.c.b16 %v2157, %v2156
    %v2179 = vpack.c.b16 %v2159, %v2158
    %v2180 = vpack.c.b16 %v2161, %v2160
    %v2181 = vpack.c.b16 %v2163, %v2162
    %v2182 = vpack.c.b16 %v2165, %v2164
    %v2183 = vpack.c.b16 %v2167, %v2166
    %2200 = vmatpush.bf16.msra.mxu0 %v2175
    %2201 = vmatpush.bf16.msra.mxu0 %v2174
    %2202 = vmatpush.bf16.msra.mxu0 %v2173
    %2203 = vmatpush.bf16.msra.mxu0 %v2172
    %2204 = vmatpush.bf16.msra.mxu0 %v2171
    %2205 = vmatpush.bf16.msra.mxu0 %v2170
    %2206 = vmatpush.bf16.msra.mxu0 %v2169
    %2207 = vmatpush.bf16.msra.mxu0 %v2168
    %2208 = vmatmul.bf16.gmra.mxu0 %v2100
    %v2209 = vpop.f32.mrf.mxu0
    %v2210 = vadd.f32 %v2052, %v2209
    %v2211 = vpop.f32.mrf.mxu0
    %2212 = vdwg.mxu0
    %2213 = vmatpush.bf16.msra.mxu0 %v2183
    %2214 = vmatpush.bf16.msra.mxu0 %v2182
    %2215 = vmatpush.bf16.msra.mxu0 %v2181
    %2216 = vmatpush.bf16.msra.mxu0 %v2180
    %2217 = vmatpush.bf16.msra.mxu0 %v2179
    %2218 = vmatpush.bf16.msra.mxu0 %v2178
    %2219 = vmatpush.bf16.msra.mxu0 %v2177
    %2220 = vmatpush.bf16.msra.mxu0 %v2176
    %2221 = vmatmul.bf16.gmra.mxu0 %v2101
    %v2222 = vpop.f32.mrf.mxu0
    %v2223 = vadd.f32 %v2210, %v2222
    %v2224 = vpop.f32.mrf.mxu0
    %2225 = vdwg.mxu0
    %v2226 = vmax.f32 %v2223, 0.0
    %v2227 = vpack.c.bf16 %v2226, %v2226
    %v2228 = vld [vmem:[%s9] sm:$0xf]
    %v2229 = vld [vmem:[%s9 + $0x4] sm:$0xf]
    %v2230 = vld [vmem:[%s9 + $0x8] sm:$0xf]
    %v2231 = vld [vmem:[%s9 + $0xc] sm:$0xf]
    %v2232 = vld [vmem:[%s9 + $0x10] sm:$0xf]
    %v2233 = vld [vmem:[%s9 + $0x14] sm:$0xf]
    %v2234 = vld [vmem:[%s9 + $0x18] sm:$0xf]
    %v2235 = vld [vmem:[%s9 + $0x1c] sm:$0xf]
    %v2236 = vld [vmem:[%s9 + $0x20] sm:$0xf]
    %v2237 = vld [vmem:[%s9 + $0x24] sm:$0xf]
    %v2238 = vld [vmem:[%s9 + $0x28] sm:$0xf]
    %v2239 = vld [vmem:[%s9 + $0x2c] sm:$0xf]
    %v2240 = vld [vmem:[%s9 + $0x30] sm:$0xf]
    %v2241 = vld [vmem:[%s9 + $0x34] sm:$0xf]
    %v2242 = vld [vmem:[%s9 + $0x38] sm:$0xf]
    %v2243 = vld [vmem:[%s9 + $0x3c] sm:$0xf]
    %v2244 = vld [vmem:[%s10] sm:$0x1]
    %v2246 = vperm.slane %v2244, 0
    %v2264 = vunpack.c.l.b16 %v2228
    %v2265 = vunpack.c.l.b16 %v2229
    %v2266 = vunpack.c.l.b16 %v2230
    %v2267 = vunpack.c.l.b16 %v2231
    %v2268 = vunpack.c.l.b16 %v2232
    %v2269 = vunpack.c.l.b16 %v2233
    %v2270 = vunpack.c.l.b16 %v2234
    %v2271 = vunpack.c.l.b16 %v2235
    %v2272 = vunpack.c.l.b16 %v2236
    %v2273 = vunpack.c.l.b16 %v2237
    %v2274 = vunpack.c.l.b16 %v2238
    %v2275 = vunpack.c.l.b16 %v2239
    %v2276 = vunpack.c.l.b16 %v2240
    %v2277 = vunpack.c.l.b16 %v2241
    %v2278 = vunpack.c.l.b16 %v2242
    %v2279 = vunpack.c.l.b16 %v2243
    %v2280 = vpack.c.b16 %v2265, %v2264
    %v2281 = vpack.c.b16 %v2267, %v2266
    %v2282 = vpack.c.b16 %v2269, %v2268
    %v2283 = vpack.c.b16 %v2271, %v2270
    %v2284 = vpack.c.b16 %v2273, %v2272
    %v2285 = vpack.c.b16 %v2275, %v2274
    %v2286 = vpack.c.b16 %v2277, %v2276
    %v2287 = vpack.c.b16 %v2279, %v2278
    %2296 = vmatpush.bf16.msra.mxu0 %v2287
    %2297 = vmatpush.bf16.msra.mxu0 %v2286
    %2298 = vmatpush.bf16.msra.mxu0 %v2285
    %2299 = vmatpush.bf16.msra.mxu0 %v2284
    %2300 = vmatpush.bf16.msra.mxu0 %v2283
    %2301 = vmatpush.bf16.msra.mxu0 %v2282
    %2302 = vmatpush.bf16.msra.mxu0 %v2281
    %2303 = vmatpush.bf16.msra.mxu0 %v2280
    %2304 = vmatmul.bf16.gmra.mxu0 %v2227
    %v2305 = vpop.f32.mrf.mxu0
    %v2306 = vadd.f32 %v2246, %v2305
    %v2307 = vpop.f32.mrf.mxu0
    %2308 = vdwg.mxu0
    %v2309 = vmax.f32 %v2306, 0.0
    %v2310 = vpack.c.bf16 %v2309, %v2309
    %v2311 = vld [vmem:[#allocation10] sm:$0xf]
    %v2312 = vld [vmem:[#allocation10 + $0x4] sm:$0xf]
    %v2313 = vld [vmem:[#allocation10 + $0x8] sm:$0xf]
    %v2314 = vld [vmem:[#allocation10 + $0xc] sm:$0xf]
    %v2315 = vld [vmem:[#allocation10 + $0x10] sm:$0xf]
    %v2316 = vld [vmem:[#allocation10 + $0x14] sm:$0xf]
    %v2317 = vld [vmem:[#allocation10 + $0x18] sm:$0xf]
    %v2318 = vld [vmem:[#allocation10 + $0x1c] sm:$0xf]
    %v2319 = vld [vmem:[%s12] sm:$0x1]
    %v2321 = vperm.slane %v2319, 0
    %v2331 = vunpack.c.l.b16 %v2311
    %v2332 = vunpack.c.l.b16 %v2312
    %v2333 = vunpack.c.l.b16 %v2313
    %v2334 = vunpack.c.l.b16 %v2314
    %v2335 = vunpack.c.l.b16 %v2315
    %v2336 = vunpack.c.l.b16 %v2316
    %v2337 = vunpack.c.l.b16 %v2317
    %v2338 = vunpack.c.l.b16 %v2318
    %v2339 = vpack.c.b16 %v2332, %v2331
    %v2340 = vpack.c.b16 %v2334, %v2333
    %v2341 = vpack.c.b16 %v2336, %v2335
    %v2342 = vpack.c.b16 %v2338, %v2337
    %v2348 = vsel %vm1019, %v2310, 0
    %2350 = vmatpush.bf16.msra.mxu0 0
    %2351 = vmatpush.bf16.msra.mxu0 0
    %2352 = vmatpush.bf16.msra.mxu0 0
    %2353 = vmatpush.bf16.msra.mxu0 0
    %2354 = vmatpush.bf16.msra.mxu0 %v2342
    %2355 = vmatpush.bf16.msra.mxu0 %v2341
    %2356 = vmatpush.bf16.msra.mxu0 %v2340
    %2357 = vmatpush.bf16.msra.mxu0 %v2339
    %2358 = vmatmul.bf16.gmra.mxu0 %v2348
    %v2359 = vpop.f32.mrf.mxu0
    %v2360 = vadd.f32 %v2321, %v2359
    %v2361 = vpop.f32.mrf.mxu0
    %2362 = vdwg.mxu0
    %v2363 = vpack.c.bf16 %v2360, %v2360
    %2364 = vst [vmem:[#allocation11] sm:$0xf] %v2363
    // Predicated region
    $region74: #{tpu_custom_call.1} parent=1 // pred_check
      _
    $region75: #{tpu_custom_call.1} parent=1 // pred_check_branch
      %2366 = sbr.rel (0) target = $region77
    $region76: #{tpu_custom_call.1} parent=1 // pred_region
      %2368 = vsyncadd [#allocation4], 0
      %s2370 = sshll.u32 [#allocation11], 4
      %s2371 = int_to_ptr.vmem [resolvable:$true] %s2370
      %s2372 = sshll.u32 %s13, 4
      %s2373 = int_to_ptr.hbm [resolvable:$true] %s2372
      %2375 = dma.vmem_to_hbm [thread:$0]  %s2371, 64, %s2373, [#allocation4]
    $region77: #{tpu_custom_call.1} parent=1 // pred_fallthru
      _
    // Predicated region
    $region78: #{tpu_custom_call.1} parent=1 // pred_check
      _
    $region79: #{tpu_custom_call.1} parent=1 // pred_check_branch
      %2377 = sbr.rel (0) target = $region81
    $region80: #{tpu_custom_call.1} parent=1 // pred_region
      %2379 = dma.done [#allocation4], 64
    $region81: #{tpu_custom_call.1} parent=1 // pred_fallthru
      _
    %2380 = vsyncpa [#allocation3], 1
    %2381 = vsyncpa [#allocation6], 1
    %2382 = vsyncpa [#allocation9], 1
    %2383 = vsyncpa [#allocation4], 1

</llo_original>
